<compile_context>
chip_gen: v7x
topology: tpu7x:2x2x1
jax: 0.10.0
libtpu: 0.0.40
codegen_flags: <defaults>
</compile_context>

<pallas_src>
import functools

import jax
import jax.numpy as jnp
from jax import lax
from jax.experimental import pallas as pl
from jax.experimental.pallas import tpu as pltpu
import numpy as np


def faster_block_kernel(xin_ref, xc_ref, wt_ref, wc_ref, bs_ref, bb_ref,
                        w2_ref, o_ref, pad_ref):
    """Grid = (batch, H-strip).

    xin_ref : (1, TH, W, C)    f32   input strip (residual + centre/pass-through matmul)
    xc_ref  : (1, H, W, C1)    f32   conv channels, full image per batch element
    wt_ref  : (8, C1, Chid)    bf16  folded 3x3*1x1 weights, off-centre taps
    wc_ref  : (C, Chid)        bf16  centre tap (rows :C1) + pass-through (rows C1:)
    bs_ref  : (1, Chid)        f32   BN scale
    bb_ref  : (1, Chid)        f32   BN bias
    w2_ref  : (Chid, C)        bf16  second 1x1 conv weight
    o_ref   : (1, TH, W, C)    f32   output strip
    pad_ref : (H+2, W+2, C1)   f32   VMEM scratch: zero-padded conv channels
    """
    _, TH, W, C = xin_ref.shape
    _, H, _, C1 = xc_ref.shape

    s = pl.program_id(1)

    # Build the zero-padded conv-channel image once per batch element: zero
    # only the borders, then one sliced store for the interior.  The scratch
    # persists across the strip axis (strip axis is "arbitrary").
    @pl.when(s == 0)
    def _():
        zrow = jnp.zeros((1, W + 2, C1), jnp.float32)
        pad_ref[pl.ds(0, 1), :, :] = zrow
        pad_ref[pl.ds(H + 1, 1), :, :] = zrow
        zcol = jnp.zeros((H + 2, 1, C1), jnp.float32)
        pad_ref[:, pl.ds(0, 1), :] = zcol
        pad_ref[:, pl.ds(W + 1, 1), :] = zcol
        pad_ref[pl.ds(1, H), pl.ds(1, W), :] = xc_ref[0]

    x2d = xin_ref[0].reshape(TH * W, C)                    # free merge (W % 8 == 0)

    # Centre tap + untouched channels: one K=C matmul over the full strip.
    z = jnp.dot(x2d.astype(jnp.bfloat16), wc_ref[...],
                preferred_element_type=jnp.float32)        # (M, Chid) f32

    # 8 off-centre taps of the folded 3x3 conv, accumulated in f32.
    row0 = pl.multiple_of(s * TH, TH)
    t = 0
    for kh in range(3):
        for kw in range(3):
            if kh == 1 and kw == 1:
                continue
            tap = pad_ref[pl.ds(row0 + kh, TH), pl.ds(kw, W), :]   # (TH, W, C1)
            z = z + jnp.dot(tap.reshape(TH * W, C1).astype(jnp.bfloat16),
                            wt_ref[t], preferred_element_type=jnp.float32)
            t += 1

    z = z * bs_ref[...] + bb_ref[...]                      # BN in f32
    h = z * jax.nn.sigmoid(z)                              # SiLU in f32 (VPU + EUP)

    y = x2d + jnp.dot(h.astype(jnp.bfloat16), w2_ref[...],
                      preferred_element_type=jnp.float32)  # residual add, f32
    o_ref[0] = y.reshape(TH, W, C)                         # free split, C-minor store


def _strip_height(h, tile_h):
    """Largest multiple of 8 that divides h, capped at tile_h; else whole image."""
    best = None
    t = 8
    while t <= min(tile_h, h):
        if h % t == 0:
            best = t
        t += 8
    return best if best is not None else h


@functools.partial(jax.jit, static_argnames=('c1', 'tile_h'))
def faster_block_pallas(x, w3, w1, bn_s, bn_b, w2, *, c1, tile_h=8):
    """x: (N, H, W, C) float32 NHWC; returns (N, H, W, C) float32."""
    N, H, W, C = x.shape
    Chid = w1.shape[1]

    th = _strip_height(H, tile_h)
    S = H // th

    # --- host-side algebraic fold (tiny, one-time, all in f32) ---
    # Compose the 3x3 partial conv with the first C1 rows of the first 1x1.
    wf = jnp.einsum('hwcd,de->hwce', w3, w1[:c1])              # (3, 3, c1, Chid)
    w_center = jnp.concatenate([wf[1, 1], w1[c1:]],
                               axis=0).astype(jnp.bfloat16)    # (C, Chid)
    off_taps = [(kh, kw) for kh in range(3) for kw in range(3)
                if not (kh == 1 and kw == 1)]
    w_taps = jnp.stack([wf[kh, kw] for kh, kw in off_taps],
                       axis=0).astype(jnp.bfloat16)            # (8, c1, Chid)
    w2b = w2.astype(jnp.bfloat16)
    bns = bn_s.reshape(1, Chid).astype(jnp.float32)
    bnb = bn_b.reshape(1, Chid).astype(jnp.float32)

    xc = x[..., :c1]                                           # (N, H, W, c1)

    grid_spec = pltpu.PrefetchScalarGridSpec(
        num_scalar_prefetch=0,
        grid=(N, S),
        in_specs=[
            pl.BlockSpec((1, th, W, C), lambda n, s: (n, s, 0, 0)),
            pl.BlockSpec((1, H, W, c1), lambda n, s: (n, 0, 0, 0)),  # reused over s
            pl.BlockSpec((8, c1, Chid), lambda n, s: (0, 0, 0)),
            pl.BlockSpec((C, Chid), lambda n, s: (0, 0)),
            pl.BlockSpec((1, Chid), lambda n, s: (0, 0)),
            pl.BlockSpec((1, Chid), lambda n, s: (0, 0)),
            pl.BlockSpec((Chid, C), lambda n, s: (0, 0)),
        ],
        out_specs=pl.BlockSpec((1, th, W, C), lambda n, s: (n, s, 0, 0)),
        scratch_shapes=[pltpu.VMEM((H + 2, W + 2, c1), jnp.float32)],
    )

    return pl.pallas_call(
        faster_block_kernel,
        out_shape=jax.ShapeDtypeStruct((N, H, W, C), jnp.float32),
        grid_spec=grid_spec,
        compiler_params=pltpu.CompilerParams(
            # Batch axis parallel (megacore); the strip axis reuses the
            # per-image padded scratch, so it must stay "arbitrary".
            dimension_semantics=("parallel", "arbitrary"),
            vmem_limit_bytes=32 * 1024 * 1024),
    )(x, xc, w_taps, w_center, bns, bnb, w2b)


def ref_forward(x, w3, w1, bn_s, bn_b, w2, c1):
    """Pure-JAX f32 reference (NHWC) of Faster_Block.forward (eval mode)."""
    x1 = x[..., :c1]
    conv = lax.conv_general_dilated(
        x1, w3, window_strides=(1, 1), padding='SAME',
        dimension_numbers=('NHWC', 'HWIO', 'NHWC'))
    mixed = jnp.concatenate([conv, x[..., c1:]], axis=-1)
    z = jnp.einsum('nhwc,cd->nhwd', mixed, w1) * bn_s + bn_b
    h = jax.nn.silu(z)
    return x + jnp.einsum('nhwc,cd->nhwd', h, w2)


if __name__ == "__main__":
    # Module config: inc == dim (no adjust_channel), n_div=4, mlp_ratio=2,
    # drop_path=0.1 (identity at eval), layer_scale_init_value=0.0.
    N, H, W = 2, 16, 16
    dim = 16
    n_div = 4
    mlp_ratio = 2
    c1 = dim // n_div                     # dim_conv3 = 4
    chid = int(dim * mlp_ratio)           # mlp hidden = 32

    key = jax.random.PRNGKey(0)
    kx, k3, k1, k2, kg, kb, km, kv = jax.random.split(key, 8)

    # input (NHWC)
    x = jax.random.normal(kx, (N, H, W, dim), jnp.float32)

    # Partial_conv3 3x3 weight (HWIO), no bias
    w3 = jax.random.normal(k3, (3, 3, c1, c1), jnp.float32) * 0.2
    # MLP conv1 (dim -> hidden, 1x1, no bias) stored as (C, Chid)
    w1 = jax.random.normal(k1, (dim, chid), jnp.float32) * 0.2
    # MLP conv2 (hidden -> dim, 1x1, no bias) stored as (Chid, C)
    w2 = jax.random.normal(k2, (chid, dim), jnp.float32) * 0.2

    # BatchNorm2d(hidden) folded: s = gamma/sqrt(var+eps), b = beta - mean*s
    gamma = 1.0 + 0.1 * jax.random.normal(kg, (chid,), jnp.float32)
    beta = 0.1 * jax.random.normal(kb, (chid,), jnp.float32)
    rmean = 0.1 * jax.random.normal(km, (chid,), jnp.float32)
    rvar = 0.5 + jnp.abs(jax.random.normal(kv, (chid,), jnp.float32)) * 0.5
    eps = 1e-5
    bn_s = gamma / jnp.sqrt(rvar + eps)
    bn_b = beta - rmean * bn_s

    out = faster_block_pallas(x, w3, w1, bn_s, bn_b, w2, c1=c1, tile_h=8)
    out = jax.block_until_ready(out)

    ref = jax.block_until_ready(ref_forward(x, w3, w1, bn_s, bn_b, w2, c1))
    # bf16 MXU operands (f32 accumulation) -> relaxed tolerance vs f32 reference.
    np.testing.assert_allclose(np.asarray(out), np.asarray(ref),
                               rtol=5e-2, atol=5e-2)
    print("KERNEL_OK")
</pallas_src>

<mosaic_0001>
module attributes {stable_mosaic.version = 11 : i64} {
  func.func @faster_block_kernel(%arg0: i32, %arg1: i32, %arg2: memref<1x8x16x16xf32, #tpu.memory_space<vmem>>, %arg3: memref<1x16x16x4xf32, #tpu.memory_space<vmem>>, %arg4: memref<8x4x32xbf16, #tpu.memory_space<vmem>>, %arg5: memref<16x32xbf16, #tpu.memory_space<vmem>>, %arg6: memref<1x32xf32, #tpu.memory_space<vmem>>, %arg7: memref<1x32xf32, #tpu.memory_space<vmem>>, %arg8: memref<32x16xbf16, #tpu.memory_space<vmem>>, %arg9: memref<1x8x16x16xf32, #tpu.memory_space<vmem>>, %arg10: memref<18x18x4xf32, #tpu.memory_space<vmem>>) attributes {dimension_semantics = [#tpu.dimension_semantics<parallel>, #tpu.dimension_semantics<arbitrary>], iteration_bounds = array<i64: 2, 2>, scalar_prefetch = 0 : i64, scratch_operands = 1 : i64, tpu.core_type = #tpu.core_type<tc>, window_params = [{transform_indices = @transform_0, window_bounds = array<i64: 1, 8, 16, 16>}, {transform_indices = @transform_1, window_bounds = array<i64: 1, 16, 16, 4>}, {pipeline_mode = #tpu.pipeline_mode<synchronous>, transform_indices = @transform_2, window_bounds = array<i64: 8, 4, 32>}, {pipeline_mode = #tpu.pipeline_mode<synchronous>, transform_indices = @transform_3, window_bounds = array<i64: 16, 32>}, {pipeline_mode = #tpu.pipeline_mode<synchronous>, transform_indices = @transform_4, window_bounds = array<i64: 1, 32>}, {pipeline_mode = #tpu.pipeline_mode<synchronous>, transform_indices = @transform_5, window_bounds = array<i64: 1, 32>}, {pipeline_mode = #tpu.pipeline_mode<synchronous>, transform_indices = @transform_6, window_bounds = array<i64: 32, 16>}, {transform_indices = @transform_7, window_bounds = array<i64: 1, 8, 16, 16>}]} {
    %c0_i32 = arith.constant 0 : i32
    %0 = arith.cmpi eq, %arg1, %c0_i32 : i32
    %1 = arith.extui %0 : i1 to i32
    %c0_i32_0 = arith.constant 0 : i32
    %2 = arith.cmpi ne, %1, %c0_i32_0 : i32
    scf.if %2 {
      %cst_65 = arith.constant 0.000000e+00 : f32
      %103 = vector.broadcast %cst_65 : f32 to vector<1x18x4xf32>
      %c0_66 = arith.constant 0 : index
      %c0_67 = arith.constant 0 : index
      %c0_68 = arith.constant 0 : index
      %104 = vector.load %arg10[%c0_66, %c0_67, %c0_68] : memref<18x18x4xf32, #tpu.memory_space<vmem>>, vector<1x18x4xf32>
      tpu.vector_store %arg10[%c0_66, %c0_67, %c0_68], %103 {strides = array<i32>} : memref<18x18x4xf32, #tpu.memory_space<vmem>>, vector<1x18x4xf32>,
      %c17 = arith.constant 17 : index
      %c0_69 = arith.constant 0 : index
      %c0_70 = arith.constant 0 : index
      %105 = vector.load %arg10[%c17, %c0_69, %c0_70] : memref<18x18x4xf32, #tpu.memory_space<vmem>>, vector<1x18x4xf32>
      tpu.vector_store %arg10[%c17, %c0_69, %c0_70], %103 {strides = array<i32>} : memref<18x18x4xf32, #tpu.memory_space<vmem>>, vector<1x18x4xf32>,
      %cst_71 = arith.constant 0.000000e+00 : f32
      %106 = vector.broadcast %cst_71 : f32 to vector<18x1x4xf32>
      %c0_72 = arith.constant 0 : index
      %c0_73 = arith.constant 0 : index
      %c0_74 = arith.constant 0 : index
      %107 = vector.load %arg10[%c0_72, %c0_73, %c0_74] : memref<18x18x4xf32, #tpu.memory_space<vmem>>, vector<18x1x4xf32>
      tpu.vector_store %arg10[%c0_72, %c0_73, %c0_74], %106 {strides = array<i32>} : memref<18x18x4xf32, #tpu.memory_space<vmem>>, vector<18x1x4xf32>,
      %c0_75 = arith.constant 0 : index
      %c17_76 = arith.constant 17 : index
      %c0_77 = arith.constant 0 : index
      %108 = vector.load %arg10[%c0_75, %c17_76, %c0_77] : memref<18x18x4xf32, #tpu.memory_space<vmem>>, vector<18x1x4xf32>
      tpu.vector_store %arg10[%c0_75, %c17_76, %c0_77], %106 {strides = array<i32>} : memref<18x18x4xf32, #tpu.memory_space<vmem>>, vector<18x1x4xf32>,
      %c0_78 = arith.constant 0 : index
      %c0_79 = arith.constant 0 : index
      %c0_80 = arith.constant 0 : index
      %c0_81 = arith.constant 0 : index
      %109 = vector.load %arg3[%c0_78, %c0_79, %c0_80, %c0_81] : memref<1x16x16x4xf32, #tpu.memory_space<vmem>>, vector<1x16x16x4xf32>
      %110 = vector.shape_cast %109 : vector<1x16x16x4xf32> to vector<16x16x4xf32>
      %c1_82 = arith.constant 1 : index
      %c1_83 = arith.constant 1 : index
      %c0_84 = arith.constant 0 : index
      %111 = vector.load %arg10[%c1_82, %c1_83, %c0_84] : memref<18x18x4xf32, #tpu.memory_space<vmem>>, vector<16x16x4xf32>
      tpu.vector_store %arg10[%c1_82, %c1_83, %c0_84], %110 {strides = array<i32>} : memref<18x18x4xf32, #tpu.memory_space<vmem>>, vector<16x16x4xf32>,
    } else {
    }
    %c0 = arith.constant 0 : index
    %c0_1 = arith.constant 0 : index
    %c0_2 = arith.constant 0 : index
    %c0_3 = arith.constant 0 : index
    %3 = vector.load %arg2[%c0, %c0_1, %c0_2, %c0_3] : memref<1x8x16x16xf32, #tpu.memory_space<vmem>>, vector<1x8x16x16xf32>
    %4 = vector.shape_cast %3 : vector<1x8x16x16xf32> to vector<8x16x16xf32>
    %5 = vector.shape_cast %4 : vector<8x16x16xf32> to vector<128x16xf32>
    %6 = arith.truncf %5 : vector<128x16xf32> to vector<128x16xbf16>
    %c0_4 = arith.constant 0 : index
    %c0_5 = arith.constant 0 : index
    %7 = vector.load %arg5[%c0_4, %c0_5] : memref<16x32xbf16, #tpu.memory_space<vmem>>, vector<16x32xbf16>
    %cst = arith.constant dense<0.000000e+00> : vector<128x32xf32>
    %8 = tpu.matmul %6, %7, %cst {dimension_numbers = #tpu.dot_dimension_numbers<[1], [0], [0], [1], [0, 0, 1, 1], [], []>} : vector<128x16xbf16>, vector<16x32xbf16>, vector<128x32xf32> -> vector<128x32xf32>
    %c8_i32 = arith.constant 8 : i32
    %9 = arith.muli %arg1, %c8_i32 : i32
    %10 = tpu.assume_multiple %9, 8 : i32
    %c0_i32_6 = arith.constant 0 : i32
    %11 = arith.addi %10, %c0_i32_6 : i32
    %12 = arith.index_cast %11 : i32 to index
    %c0_7 = arith.constant 0 : index
    %c0_8 = arith.constant 0 : index
    %13 = vector.load %arg10[%12, %c0_7, %c0_8] : memref<18x18x4xf32, #tpu.memory_space<vmem>>, vector<8x16x4xf32>
    %14 = vector.shape_cast %13 : vector<8x16x4xf32> to vector<128x4xf32>
    %15 = arith.truncf %14 : vector<128x4xf32> to vector<128x4xbf16>
    %c0_9 = arith.constant 0 : index
    %c0_10 = arith.constant 0 : index
    %c0_11 = arith.constant 0 : index
    %16 = vector.load %arg4[%c0_9, %c0_10, %c0_11] : memref<8x4x32xbf16, #tpu.memory_space<vmem>>, vector<1x4x32xbf16>
    %17 = vector.shape_cast %16 : vector<1x4x32xbf16> to vector<4x32xbf16>
    %cst_12 = arith.constant dense<0.000000e+00> : vector<128x32xf32>
    %18 = tpu.matmul %15, %17, %cst_12 {dimension_numbers = #tpu.dot_dimension_numbers<[1], [0], [0], [1], [0, 0, 1, 1], [], []>} : vector<128x4xbf16>, vector<4x32xbf16>, vector<128x32xf32> -> vector<128x32xf32>
    %19 = arith.addf %8, %18 : vector<128x32xf32>
    %c0_i32_13 = arith.constant 0 : i32
    %20 = arith.addi %10, %c0_i32_13 : i32
    %21 = arith.index_cast %20 : i32 to index
    %c1 = arith.constant 1 : index
    %c0_14 = arith.constant 0 : index
    %22 = vector.load %arg10[%21, %c1, %c0_14] : memref<18x18x4xf32, #tpu.memory_space<vmem>>, vector<8x16x4xf32>
    %23 = vector.shape_cast %22 : vector<8x16x4xf32> to vector<128x4xf32>
    %24 = arith.truncf %23 : vector<128x4xf32> to vector<128x4xbf16>
    %c1_15 = arith.constant 1 : index
    %c0_16 = arith.constant 0 : index
    %c0_17 = arith.constant 0 : index
    %25 = vector.load %arg4[%c1_15, %c0_16, %c0_17] : memref<8x4x32xbf16, #tpu.memory_space<vmem>>, vector<1x4x32xbf16>
    %26 = vector.shape_cast %25 : vector<1x4x32xbf16> to vector<4x32xbf16>
    %cst_18 = arith.constant dense<0.000000e+00> : vector<128x32xf32>
    %27 = tpu.matmul %24, %26, %cst_18 {dimension_numbers = #tpu.dot_dimension_numbers<[1], [0], [0], [1], [0, 0, 1, 1], [], []>} : vector<128x4xbf16>, vector<4x32xbf16>, vector<128x32xf32> -> vector<128x32xf32>
    %28 = arith.addf %19, %27 : vector<128x32xf32>
    %c0_i32_19 = arith.constant 0 : i32
    %29 = arith.addi %10, %c0_i32_19 : i32
    %30 = arith.index_cast %29 : i32 to index
    %c2 = arith.constant 2 : index
    %c0_20 = arith.constant 0 : index
    %31 = vector.load %arg10[%30, %c2, %c0_20] : memref<18x18x4xf32, #tpu.memory_space<vmem>>, vector<8x16x4xf32>
    %32 = vector.shape_cast %31 : vector<8x16x4xf32> to vector<128x4xf32>
    %33 = arith.truncf %32 : vector<128x4xf32> to vector<128x4xbf16>
    %c2_21 = arith.constant 2 : index
    %c0_22 = arith.constant 0 : index
    %c0_23 = arith.constant 0 : index
    %34 = vector.load %arg4[%c2_21, %c0_22, %c0_23] : memref<8x4x32xbf16, #tpu.memory_space<vmem>>, vector<1x4x32xbf16>
    %35 = vector.shape_cast %34 : vector<1x4x32xbf16> to vector<4x32xbf16>
    %cst_24 = arith.constant dense<0.000000e+00> : vector<128x32xf32>
    %36 = tpu.matmul %33, %35, %cst_24 {dimension_numbers = #tpu.dot_dimension_numbers<[1], [0], [0], [1], [0, 0, 1, 1], [], []>} : vector<128x4xbf16>, vector<4x32xbf16>, vector<128x32xf32> -> vector<128x32xf32>
    %37 = arith.addf %28, %36 : vector<128x32xf32>
    %c1_i32 = arith.constant 1 : i32
    %38 = arith.addi %10, %c1_i32 : i32
    %39 = arith.index_cast %38 : i32 to index
    %c0_25 = arith.constant 0 : index
    %c0_26 = arith.constant 0 : index
    %40 = vector.load %arg10[%39, %c0_25, %c0_26] : memref<18x18x4xf32, #tpu.memory_space<vmem>>, vector<8x16x4xf32>
    %41 = vector.shape_cast %40 : vector<8x16x4xf32> to vector<128x4xf32>
    %42 = arith.truncf %41 : vector<128x4xf32> to vector<128x4xbf16>
    %c3 = arith.constant 3 : index
    %c0_27 = arith.constant 0 : index
    %c0_28 = arith.constant 0 : index
    %43 = vector.load %arg4[%c3, %c0_27, %c0_28] : memref<8x4x32xbf16, #tpu.memory_space<vmem>>, vector<1x4x32xbf16>
    %44 = vector.shape_cast %43 : vector<1x4x32xbf16> to vector<4x32xbf16>
    %cst_29 = arith.constant dense<0.000000e+00> : vector<128x32xf32>
    %45 = tpu.matmul %42, %44, %cst_29 {dimension_numbers = #tpu.dot_dimension_numbers<[1], [0], [0], [1], [0, 0, 1, 1], [], []>} : vector<128x4xbf16>, vector<4x32xbf16>, vector<128x32xf32> -> vector<128x32xf32>
    %46 = arith.addf %37, %45 : vector<128x32xf32>
    %c1_i32_30 = arith.constant 1 : i32
    %47 = arith.addi %10, %c1_i32_30 : i32
    %48 = arith.index_cast %47 : i32 to index
    %c2_31 = arith.constant 2 : index
    %c0_32 = arith.constant 0 : index
    %49 = vector.load %arg10[%48, %c2_31, %c0_32] : memref<18x18x4xf32, #tpu.memory_space<vmem>>, vector<8x16x4xf32>
    %50 = vector.shape_cast %49 : vector<8x16x4xf32> to vector<128x4xf32>
    %51 = arith.truncf %50 : vector<128x4xf32> to vector<128x4xbf16>
    %c4 = arith.constant 4 : index
    %c0_33 = arith.constant 0 : index
    %c0_34 = arith.constant 0 : index
    %52 = vector.load %arg4[%c4, %c0_33, %c0_34] : memref<8x4x32xbf16, #tpu.memory_space<vmem>>, vector<1x4x32xbf16>
    %53 = vector.shape_cast %52 : vector<1x4x32xbf16> to vector<4x32xbf16>
    %cst_35 = arith.constant dense<0.000000e+00> : vector<128x32xf32>
    %54 = tpu.matmul %51, %53, %cst_35 {dimension_numbers = #tpu.dot_dimension_numbers<[1], [0], [0], [1], [0, 0, 1, 1], [], []>} : vector<128x4xbf16>, vector<4x32xbf16>, vector<128x32xf32> -> vector<128x32xf32>
    %55 = arith.addf %46, %54 : vector<128x32xf32>
    %c2_i32 = arith.constant 2 : i32
    %56 = arith.addi %10, %c2_i32 : i32
    %57 = arith.index_cast %56 : i32 to index
    %c0_36 = arith.constant 0 : index
    %c0_37 = arith.constant 0 : index
    %58 = vector.load %arg10[%57, %c0_36, %c0_37] : memref<18x18x4xf32, #tpu.memory_space<vmem>>, vector<8x16x4xf32>
    %59 = vector.shape_cast %58 : vector<8x16x4xf32> to vector<128x4xf32>
    %60 = arith.truncf %59 : vector<128x4xf32> to vector<128x4xbf16>
    %c5 = arith.constant 5 : index
    %c0_38 = arith.constant 0 : index
    %c0_39 = arith.constant 0 : index
    %61 = vector.load %arg4[%c5, %c0_38, %c0_39] : memref<8x4x32xbf16, #tpu.memory_space<vmem>>, vector<1x4x32xbf16>
    %62 = vector.shape_cast %61 : vector<1x4x32xbf16> to vector<4x32xbf16>
    %cst_40 = arith.constant dense<0.000000e+00> : vector<128x32xf32>
    %63 = tpu.matmul %60, %62, %cst_40 {dimension_numbers = #tpu.dot_dimension_numbers<[1], [0], [0], [1], [0, 0, 1, 1], [], []>} : vector<128x4xbf16>, vector<4x32xbf16>, vector<128x32xf32> -> vector<128x32xf32>
    %64 = arith.addf %55, %63 : vector<128x32xf32>
    %c2_i32_41 = arith.constant 2 : i32
    %65 = arith.addi %10, %c2_i32_41 : i32
    %66 = arith.index_cast %65 : i32 to index
    %c1_42 = arith.constant 1 : index
    %c0_43 = arith.constant 0 : index
    %67 = vector.load %arg10[%66, %c1_42, %c0_43] : memref<18x18x4xf32, #tpu.memory_space<vmem>>, vector<8x16x4xf32>
    %68 = vector.shape_cast %67 : vector<8x16x4xf32> to vector<128x4xf32>
    %69 = arith.truncf %68 : vector<128x4xf32> to vector<128x4xbf16>
    %c6 = arith.constant 6 : index
    %c0_44 = arith.constant 0 : index
    %c0_45 = arith.constant 0 : index
    %70 = vector.load %arg4[%c6, %c0_44, %c0_45] : memref<8x4x32xbf16, #tpu.memory_space<vmem>>, vector<1x4x32xbf16>
    %71 = vector.shape_cast %70 : vector<1x4x32xbf16> to vector<4x32xbf16>
    %cst_46 = arith.constant dense<0.000000e+00> : vector<128x32xf32>
    %72 = tpu.matmul %69, %71, %cst_46 {dimension_numbers = #tpu.dot_dimension_numbers<[1], [0], [0], [1], [0, 0, 1, 1], [], []>} : vector<128x4xbf16>, vector<4x32xbf16>, vector<128x32xf32> -> vector<128x32xf32>
    %73 = arith.addf %64, %72 : vector<128x32xf32>
    %c2_i32_47 = arith.constant 2 : i32
    %74 = arith.addi %10, %c2_i32_47 : i32
    %75 = arith.index_cast %74 : i32 to index
    %c2_48 = arith.constant 2 : index
    %c0_49 = arith.constant 0 : index
    %76 = vector.load %arg10[%75, %c2_48, %c0_49] : memref<18x18x4xf32, #tpu.memory_space<vmem>>, vector<8x16x4xf32>
    %77 = vector.shape_cast %76 : vector<8x16x4xf32> to vector<128x4xf32>
    %78 = arith.truncf %77 : vector<128x4xf32> to vector<128x4xbf16>
    %c7 = arith.constant 7 : index
    %c0_50 = arith.constant 0 : index
    %c0_51 = arith.constant 0 : index
    %79 = vector.load %arg4[%c7, %c0_50, %c0_51] : memref<8x4x32xbf16, #tpu.memory_space<vmem>>, vector<1x4x32xbf16>
    %80 = vector.shape_cast %79 : vector<1x4x32xbf16> to vector<4x32xbf16>
    %cst_52 = arith.constant dense<0.000000e+00> : vector<128x32xf32>
    %81 = tpu.matmul %78, %80, %cst_52 {dimension_numbers = #tpu.dot_dimension_numbers<[1], [0], [0], [1], [0, 0, 1, 1], [], []>} : vector<128x4xbf16>, vector<4x32xbf16>, vector<128x32xf32> -> vector<128x32xf32>
    %82 = arith.addf %73, %81 : vector<128x32xf32>
    %c0_53 = arith.constant 0 : index
    %c0_54 = arith.constant 0 : index
    %83 = vector.load %arg6[%c0_53, %c0_54] : memref<1x32xf32, #tpu.memory_space<vmem>>, vector<1x32xf32>
    %84 = vector.broadcast %83 : vector<1x32xf32> to vector<128x32xf32>
    %85 = arith.mulf %82, %84 : vector<128x32xf32>
    %c0_55 = arith.constant 0 : index
    %c0_56 = arith.constant 0 : index
    %86 = vector.load %arg7[%c0_55, %c0_56] : memref<1x32xf32, #tpu.memory_space<vmem>>, vector<1x32xf32>
    %87 = vector.broadcast %86 : vector<1x32xf32> to vector<128x32xf32>
    %88 = arith.addf %85, %87 : vector<128x32xf32>
    %89 = arith.negf %88 : vector<128x32xf32>
    %90 = math.exp %89 : vector<128x32xf32>
    %cst_57 = arith.constant 1.000000e+00 : f32
    %91 = vector.broadcast %cst_57 : f32 to vector<128x32xf32>
    %92 = arith.addf %91, %90 : vector<128x32xf32>
    %93 = arith.divf %91, %92 : vector<128x32xf32>
    %94 = arith.mulf %88, %93 : vector<128x32xf32>
    %95 = arith.truncf %94 : vector<128x32xf32> to vector<128x32xbf16>
    %c0_58 = arith.constant 0 : index
    %c0_59 = arith.constant 0 : index
    %96 = vector.load %arg8[%c0_58, %c0_59] : memref<32x16xbf16, #tpu.memory_space<vmem>>, vector<32x16xbf16>
    %cst_60 = arith.constant dense<0.000000e+00> : vector<128x16xf32>
    %97 = tpu.matmul %95, %96, %cst_60 {dimension_numbers = #tpu.dot_dimension_numbers<[1], [0], [0], [1], [0, 0, 1, 1], [], []>} : vector<128x32xbf16>, vector<32x16xbf16>, vector<128x16xf32> -> vector<128x16xf32>
    %98 = arith.addf %5, %97 : vector<128x16xf32>
    %99 = vector.shape_cast %98 : vector<128x16xf32> to vector<8x16x16xf32>
    %c0_61 = arith.constant 0 : index
    %c0_62 = arith.constant 0 : index
    %c0_63 = arith.constant 0 : index
    %c0_64 = arith.constant 0 : index
    %100 = vector.load %arg9[%c0_61, %c0_62, %c0_63, %c0_64] : memref<1x8x16x16xf32, #tpu.memory_space<vmem>>, vector<1x8x16x16xf32>
    %101 = vector.shape_cast %100 : vector<1x8x16x16xf32> to vector<8x16x16xf32>
    %102 = vector.shape_cast %99 : vector<8x16x16xf32> to vector<1x8x16x16xf32>
    tpu.vector_store %arg9[%c0_61, %c0_62, %c0_63, %c0_64], %102 {strides = array<i32>} : memref<1x8x16x16xf32, #tpu.memory_space<vmem>>, vector<1x8x16x16xf32>,
    return
  }
  func.func @transform_0(%arg0: i32, %arg1: i32) -> (i32, i32, i32, i32) {
    %c0_i32 = arith.constant 0 : i32
    %c0_i32_0 = arith.constant 0 : i32
    %c0_i32_1 = arith.constant 0 : i32
    return %arg0, %arg1, %c0_i32, %c0_i32_0 : i32, i32, i32, i32
  }
  func.func @transform_1(%arg0: i32, %arg1: i32) -> (i32, i32, i32, i32) {
    %c0_i32 = arith.constant 0 : i32
    %c0_i32_0 = arith.constant 0 : i32
    %c0_i32_1 = arith.constant 0 : i32
    %c0_i32_2 = arith.constant 0 : i32
    return %arg0, %c0_i32, %c0_i32_0, %c0_i32_1 : i32, i32, i32, i32
  }
  func.func @transform_2(%arg0: i32, %arg1: i32) -> (i32, i32, i32) {
    %c0_i32 = arith.constant 0 : i32
    %c0_i32_0 = arith.constant 0 : i32
    %c0_i32_1 = arith.constant 0 : i32
    %c0_i32_2 = arith.constant 0 : i32
    return %c0_i32, %c0_i32_0, %c0_i32_1 : i32, i32, i32
  }
  func.func @transform_3(%arg0: i32, %arg1: i32) -> (i32, i32) {
    %c0_i32 = arith.constant 0 : i32
    %c0_i32_0 = arith.constant 0 : i32
    %c0_i32_1 = arith.constant 0 : i32
    return %c0_i32, %c0_i32_0 : i32, i32
  }
  func.func @transform_4(%arg0: i32, %arg1: i32) -> (i32, i32) {
    %c0_i32 = arith.constant 0 : i32
    %c0_i32_0 = arith.constant 0 : i32
    %c0_i32_1 = arith.constant 0 : i32
    return %c0_i32, %c0_i32_0 : i32, i32
  }
  func.func @transform_5(%arg0: i32, %arg1: i32) -> (i32, i32) {
    %c0_i32 = arith.constant 0 : i32
    %c0_i32_0 = arith.constant 0 : i32
    %c0_i32_1 = arith.constant 0 : i32
    return %c0_i32, %c0_i32_0 : i32, i32
  }
  func.func @transform_6(%arg0: i32, %arg1: i32) -> (i32, i32) {
    %c0_i32 = arith.constant 0 : i32
    %c0_i32_0 = arith.constant 0 : i32
    %c0_i32_1 = arith.constant 0 : i32
    return %c0_i32, %c0_i32_0 : i32, i32
  }
  func.func @transform_7(%arg0: i32, %arg1: i32) -> (i32, i32, i32, i32) {
    %c0_i32 = arith.constant 0 : i32
    %c0_i32_0 = arith.constant 0 : i32
    %c0_i32_1 = arith.constant 0 : i32
    return %arg0, %arg1, %c0_i32, %c0_i32_0 : i32, i32, i32, i32
  }
}

</mosaic_0001>

<llo_original>
// kernel: faster_block_pallas.1
$region0: #{faster_block_pallas.1}
  #allocation0 [shape = 'u32[]', space=smem, size = 0x4, offset = 0x4, fixed_abs, tag = 'smem constant byte address 0x4 - core index']
  #allocation1 [shape = 'u32[144,128]{1,0:T(1,128)}', space=vmem, size = 0x12000, scoped, tag = 'internal scratch']
  #allocation2 [shape = 'f32[18,18,4]{2,1,0:T(8,128)}', space=vmem, size = 0x36000, scoped, tag = 'scratch operand']
  %s0 = inlined_call_operand.hbm [shape: f32[2,16,16,16], index: 0, kind: input, shape index: {}, may-alias: {0,1}]
  %s1 = inlined_call_operand.hbm [shape: f32[2,16,16,4], index: 1, kind: input, shape index: {}, may-alias: {0,1}]
  %s2 = inlined_call_operand.vmem [shape: bf16[8,4,32], index: 2, kind: input, shape index: {}]
  %s3 = inlined_call_operand.vmem [shape: bf16[16,32], index: 3, kind: input, shape index: {}]
  %s4 = inlined_call_operand.vmem [shape: f32[1,32], index: 4, kind: input, shape index: {}]
  %s5 = inlined_call_operand.vmem [shape: f32[1,32], index: 5, kind: input, shape index: {}]
  %s6 = inlined_call_operand.vmem [shape: bf16[32,16], index: 6, kind: input, shape index: {}]
  %s7 = inlined_call_operand.hbm [shape: f32[2,16,16,16], index: 7, kind: output, shape index: {}]
  %s8 = sld [smem:[#allocation0]]
  $region73: #{faster_block_pallas.1} parent=0
    _
  %s10 = ssub.s32 1, %s8
  %s11 = scalar_select 0, %s10, %s8
  $region1: #{faster_block_pallas.1} parent=0
    #allocation3 [shape = 'u8[131072]{0}', space=vmem, size = 0x20000, scoped, tag = 'input window, operand 0']
    #allocation4 [shape = 's32[2]{0}', space=sflag, size = 0x8, scoped, tag = 'scoped memory for faster_block_pallas.1']
    #allocation5 [shape = 's32[2]{0}', space=sflag, size = 0x8, scoped, tag = 'scoped memory for faster_block_pallas.1']
    #allocation6 [shape = 'u8[262144]{0}', space=vmem, size = 0x40000, scoped, tag = 'input window, operand 1']
    #allocation7 [shape = 's32[2]{0}', space=sflag, size = 0x8, scoped, tag = 'scoped memory for faster_block_pallas.1']
    #allocation8 [shape = 'u8[131072]{0}', space=vmem, size = 0x20000, scoped, tag = 'output window, operand 0']
    %12 = vsyncpa [#allocation4], 0
    %s13 = scalar_lea.sflag [#allocation4], 1
    %14 = vsyncpa %s13, 0
    %15 = vsyncpa [#allocation7], 0
    %s16 = scalar_lea.sflag [#allocation7], 1
    %17 = vsyncpa %s16, 0
    %18 = vsyncpa [#allocation5], 0
    %s19 = scalar_lea.sflag [#allocation5], 1
    %20 = vsyncpa %s19, 0
    loop: start=0, step=1, limit=6
    $region2: #{faster_block_pallas.1} parent=1 // loop_pre_header
      _
    $region3: #{faster_block_pallas.1} parent=1 // loop_header
      %s22 = sphi 0, %s26
      %p23 = scmp.ge.s32.totalorder %s22, 6
      %s29 = sphi 0, %s41
      %s30 = sphi 0, %s37
      %s31 = sphi 0, %s29
      %s32 = sphi 0, %s30
      %s33 = sphi 0, %s31
      %s34 = sphi 0, %s32
      %s46 = sphi 0, %s48
      %s49 = sphi 0, %s46
      %s50 = sphi 0, %s49
      %s66 = sphi 0, %s50
      %s72 = sphi 0, %s74
      %s75 = sphi 0, %s72
      %s76 = sphi 0, %s75
      %s92 = sphi 0, %s76
      %s96 = sphi 0, %s96
      %s98 = sphi 0, %s96
      %s99 = sphi 0, %s98
      %s113 = sphi 0, %s99
      %s117 = sphi 0, %s117
      %s119 = sphi 0, %s117
      %s120 = sphi 0, %s119
      %s134 = sphi 0, %s120
      %s138 = sphi 0, %s138
      %s140 = sphi 0, %s138
      %s141 = sphi 0, %s140
      %s155 = sphi 0, %s141
      %s159 = sphi 0, %s159
      %s161 = sphi 0, %s159
      %s162 = sphi 0, %s161
      %s176 = sphi 0, %s162
      %s180 = sphi 0, %s180
      %s182 = sphi 0, %s180
      %s183 = sphi 0, %s182
      %s197 = sphi 0, %s183
      %s205 = sphi 0, %s207
      %s208 = sphi 0, %s205
      %s209 = sphi 0, %s208
      %s225 = sphi 0, %s209
    $region4: #{faster_block_pallas.1} parent=1 // loop_header_branch
      %25 = sbr.rel (%p23) target = $region8
    $region5: #{faster_block_pallas.1} parent=1 // loop_body
      %s27 = ssub.s32 %s22, 1
      %s28 = ssub.s32 %s22, 2
      %s35 = sadd.s32 1, %s30
      %p36 = scmp.ge.s32.totalorder %s35, 2
      %s37 = scalar_select %p36, 0, %s35
      %s38 = sadd.s32 1, %s29
      %s39 = scalar_select %p36, %s38, %s29
      %p40 = scmp.ge.s32.totalorder %s39, 2
      %s41 = scalar_select %p40, 0, %s39
      %s42 = ssub.s32 %s29, %s41
      %s43 = ssub.s32 %s30, %s37
      %s44 = sor.u32 %s42, %s43
      %p45 = scmp.eq.s32.totalorder %s44, 0
      %s47 = sadd.s32 %s46, 1
      %s48 = scalar_select %p45, %s46, %s47
      %p51 = pneg %p45
      %p52 = scmp.eq.s32.totalorder %s22, 3
      %p53 = por %p51, %p52
      %p54 = scmp.ne.s32.totalorder %s46, %s49
      %p55 = scmp.eq.s32.totalorder %s22, 0
      %p56 = por %p54, %p55
      %p57 = scmp.ne.s32.totalorder %s46, %s49
      %p58 = scmp.eq.s32.totalorder %s27, 3
      %p59 = por %p57, %p58
      %p60 = scmp.ne.s32.totalorder %s49, %s50
      %p61 = scmp.eq.s32.totalorder %s27, 0
      %p62 = por %p60, %p61
      %p63 = scmp.ne.s32.totalorder %s49, %s50
      %p64 = scmp.eq.s32.totalorder %s28, 3
      %p65 = por %p63, %p64
      %p67 = scmp.ne.s32.totalorder %s50, %s66
      %p68 = scmp.eq.s32.totalorder %s28, 0
      %p69 = por %p67, %p68
      %s70 = ssub.s32 %s29, %s41
      %p71 = scmp.eq.s32.totalorder %s70, 0
      %s73 = sadd.s32 %s72, 1
      %s74 = scalar_select %p71, %s72, %s73
      %p77 = pneg %p71
      %p78 = scmp.eq.s32.totalorder %s22, 3
      %p79 = por %p77, %p78
      %p80 = scmp.ne.s32.totalorder %s72, %s75
      %p81 = scmp.eq.s32.totalorder %s22, 0
      %p82 = por %p80, %p81
      %p83 = scmp.ne.s32.totalorder %s72, %s75
      %p84 = scmp.eq.s32.totalorder %s27, 3
      %p85 = por %p83, %p84
      %p86 = scmp.ne.s32.totalorder %s75, %s76
      %p87 = scmp.eq.s32.totalorder %s27, 0
      %p88 = por %p86, %p87
      %p89 = scmp.ne.s32.totalorder %s75, %s76
      %p90 = scmp.eq.s32.totalorder %s28, 3
      %p91 = por %p89, %p90
      %p93 = scmp.ne.s32.totalorder %s76, %s92
      %p94 = scmp.eq.s32.totalorder %s28, 0
      %p95 = por %p93, %p94
      %s97 = sadd.s32 %s96, 1
      %p100 = scmp.eq.s32.totalorder %s22, 3
      %p101 = scmp.ne.s32.totalorder %s96, %s98
      %p102 = scmp.eq.s32.totalorder %s22, 0
      %p103 = por %p101, %p102
      %p104 = scmp.ne.s32.totalorder %s96, %s98
      %p105 = scmp.eq.s32.totalorder %s27, 3
      %p106 = por %p104, %p105
      %p107 = scmp.ne.s32.totalorder %s98, %s99
      %p108 = scmp.eq.s32.totalorder %s27, 0
      %p109 = por %p107, %p108
      %p110 = scmp.ne.s32.totalorder %s98, %s99
      %p111 = scmp.eq.s32.totalorder %s28, 3
      %p112 = por %p110, %p111
      %p114 = scmp.ne.s32.totalorder %s99, %s113
      %p115 = scmp.eq.s32.totalorder %s28, 0
      %p116 = por %p114, %p115
      %s118 = sadd.s32 %s117, 1
      %p121 = scmp.eq.s32.totalorder %s22, 3
      %p122 = scmp.ne.s32.totalorder %s117, %s119
      %p123 = scmp.eq.s32.totalorder %s22, 0
      %p124 = por %p122, %p123
      %p125 = scmp.ne.s32.totalorder %s117, %s119
      %p126 = scmp.eq.s32.totalorder %s27, 3
      %p127 = por %p125, %p126
      %p128 = scmp.ne.s32.totalorder %s119, %s120
      %p129 = scmp.eq.s32.totalorder %s27, 0
      %p130 = por %p128, %p129
      %p131 = scmp.ne.s32.totalorder %s119, %s120
      %p132 = scmp.eq.s32.totalorder %s28, 3
      %p133 = por %p131, %p132
      %p135 = scmp.ne.s32.totalorder %s120, %s134
      %p136 = scmp.eq.s32.totalorder %s28, 0
      %p137 = por %p135, %p136
      %s139 = sadd.s32 %s138, 1
      %p142 = scmp.eq.s32.totalorder %s22, 3
      %p143 = scmp.ne.s32.totalorder %s138, %s140
      %p144 = scmp.eq.s32.totalorder %s22, 0
      %p145 = por %p143, %p144
      %p146 = scmp.ne.s32.totalorder %s138, %s140
      %p147 = scmp.eq.s32.totalorder %s27, 3
      %p148 = por %p146, %p147
      %p149 = scmp.ne.s32.totalorder %s140, %s141
      %p150 = scmp.eq.s32.totalorder %s27, 0
      %p151 = por %p149, %p150
      %p152 = scmp.ne.s32.totalorder %s140, %s141
      %p153 = scmp.eq.s32.totalorder %s28, 3
      %p154 = por %p152, %p153
      %p156 = scmp.ne.s32.totalorder %s141, %s155
      %p157 = scmp.eq.s32.totalorder %s28, 0
      %p158 = por %p156, %p157
      %s160 = sadd.s32 %s159, 1
      %p163 = scmp.eq.s32.totalorder %s22, 3
      %p164 = scmp.ne.s32.totalorder %s159, %s161
      %p165 = scmp.eq.s32.totalorder %s22, 0
      %p166 = por %p164, %p165
      %p167 = scmp.ne.s32.totalorder %s159, %s161
      %p168 = scmp.eq.s32.totalorder %s27, 3
      %p169 = por %p167, %p168
      %p170 = scmp.ne.s32.totalorder %s161, %s162
      %p171 = scmp.eq.s32.totalorder %s27, 0
      %p172 = por %p170, %p171
      %p173 = scmp.ne.s32.totalorder %s161, %s162
      %p174 = scmp.eq.s32.totalorder %s28, 3
      %p175 = por %p173, %p174
      %p177 = scmp.ne.s32.totalorder %s162, %s176
      %p178 = scmp.eq.s32.totalorder %s28, 0
      %p179 = por %p177, %p178
      %s181 = sadd.s32 %s180, 1
      %p184 = scmp.eq.s32.totalorder %s22, 3
      %p185 = scmp.ne.s32.totalorder %s180, %s182
      %p186 = scmp.eq.s32.totalorder %s22, 0
      %p187 = por %p185, %p186
      %p188 = scmp.ne.s32.totalorder %s180, %s182
      %p189 = scmp.eq.s32.totalorder %s27, 3
      %p190 = por %p188, %p189
      %p191 = scmp.ne.s32.totalorder %s182, %s183
      %p192 = scmp.eq.s32.totalorder %s27, 0
      %p193 = por %p191, %p192
      %p194 = scmp.ne.s32.totalorder %s182, %s183
      %p195 = scmp.eq.s32.totalorder %s28, 3
      %p196 = por %p194, %p195
      %p198 = scmp.ne.s32.totalorder %s183, %s197
      %p199 = scmp.eq.s32.totalorder %s28, 0
      %p200 = por %p198, %p199
      %s201 = ssub.s32 %s29, %s41
      %s202 = ssub.s32 %s30, %s37
      %s203 = sor.u32 %s201, %s202
      %p204 = scmp.eq.s32.totalorder %s203, 0
      %s206 = sadd.s32 %s205, 1
      %s207 = scalar_select %p204, %s205, %s206
      %p210 = pneg %p204
      %p211 = scmp.eq.s32.totalorder %s22, 3
      %p212 = por %p210, %p211
      %p213 = scmp.ne.s32.totalorder %s205, %s208
      %p214 = scmp.eq.s32.totalorder %s22, 0
      %p215 = por %p213, %p214
      %p216 = scmp.ne.s32.totalorder %s205, %s208
      %p217 = scmp.eq.s32.totalorder %s27, 3
      %p218 = por %p216, %p217
      %p219 = scmp.ne.s32.totalorder %s208, %s209
      %p220 = scmp.eq.s32.totalorder %s27, 0
      %p221 = por %p219, %p220
      %p222 = scmp.ne.s32.totalorder %s208, %s209
      %p223 = scmp.eq.s32.totalorder %s28, 3
      %p224 = por %p222, %p223
      %p226 = scmp.ne.s32.totalorder %s209, %s225
      %p227 = scmp.eq.s32.totalorder %s28, 0
      %p228 = por %p226, %p227
      %p229 = scmp.le.s32.totalorder 1, %s22
      %p230 = scmp.lt.s32.totalorder %s22, 5
      %p231 = pnand %p229, %p230
      %p232 = pneg %p231
      // Predicated region
      $region9: #{faster_block_pallas.1} parent=5 // pred_check
        _
      $region10: #{faster_block_pallas.1} parent=5 // pred_check_branch
        %234 = sbr.rel (%p231) target = $region12
      $region11: #{faster_block_pallas.1} parent=5 // pred_region
        %s235 = ssub.s32 %s22, 1
        // Predicated region
        $region13: #{faster_block_pallas.1} parent=11 // pred_check
          %p236 = pneg %p109
        $region14: #{faster_block_pallas.1} parent=11 // pred_check_branch
          %238 = sbr.rel (%p236) target = $region16
        $region15: #{faster_block_pallas.1} parent=11 // pred_region
          _
        $region16: #{faster_block_pallas.1} parent=11 // pred_fallthru
          _
        // Predicated region
        $region17: #{faster_block_pallas.1} parent=11 // pred_check
          %p239 = pneg %p130
        $region18: #{faster_block_pallas.1} parent=11 // pred_check_branch
          %241 = sbr.rel (%p239) target = $region20
        $region19: #{faster_block_pallas.1} parent=11 // pred_region
          _
        $region20: #{faster_block_pallas.1} parent=11 // pred_fallthru
          _
        // Predicated region
        $region21: #{faster_block_pallas.1} parent=11 // pred_check
          %p242 = pneg %p151
        $region22: #{faster_block_pallas.1} parent=11 // pred_check_branch
          %244 = sbr.rel (%p242) target = $region24
        $region23: #{faster_block_pallas.1} parent=11 // pred_region
          _
        $region24: #{faster_block_pallas.1} parent=11 // pred_fallthru
          _
        // Predicated region
        $region25: #{faster_block_pallas.1} parent=11 // pred_check
          %p245 = pneg %p172
        $region26: #{faster_block_pallas.1} parent=11 // pred_check_branch
          %247 = sbr.rel (%p245) target = $region28
        $region27: #{faster_block_pallas.1} parent=11 // pred_region
          _
        $region28: #{faster_block_pallas.1} parent=11 // pred_fallthru
          _
        // Predicated region
        $region29: #{faster_block_pallas.1} parent=11 // pred_check
          %p248 = pneg %p193
        $region30: #{faster_block_pallas.1} parent=11 // pred_check_branch
          %250 = sbr.rel (%p248) target = $region32
        $region31: #{faster_block_pallas.1} parent=11 // pred_region
          _
        $region32: #{faster_block_pallas.1} parent=11 // pred_fallthru
          _
      $region12: #{faster_block_pallas.1} parent=5 // pred_fallthru
        _
      %p251 = scmp.lt.s32.totalorder %s22, 4
      // Predicated region
      $region33: #{faster_block_pallas.1} parent=5 // pred_check
        %p252 = pneg %p251
      $region34: #{faster_block_pallas.1} parent=5 // pred_check_branch
        %254 = sbr.rel (%p252) target = $region36
      $region35: #{faster_block_pallas.1} parent=5 // pred_region
        // Predicated region
        $region37: #{faster_block_pallas.1} parent=35 // pred_check
          %p255 = pneg %p56
        $region38: #{faster_block_pallas.1} parent=35 // pred_check_branch
          %257 = sbr.rel (%p255) target = $region40
        $region39: #{faster_block_pallas.1} parent=35 // pred_region
          %s258 = sand.u32 %s46, 1
          %s259 = scalar_lea.sflag [#allocation4], %s258
          %s260 = sand.u32 %s46, 1
          %s261 = smul.addr %s260, 128
          %s262 = scalar_lea.vmem [#allocation3], %s261
          %s263 = smul.u32 8, %s30
          %s265 = ssub.s32 2048, 2048
          %266 = vsyncadd %s259, %s265
          %s267 = smul.addr %s263, 2
          %s268 = smul.addr %s29, 32
          %s269 = sadd.s32 %s267, %s268
          %s270 = smul.addr %s269, 128
          %s271 = scalar_lea.hbm %s0, %s270
          %s272 = sshll.u32 %s262, 4
          %s273 = int_to_ptr.vmem [resolvable:$true] %s272
          %278 = dma.hbm_to_vmem [thread:$0]  %s271, 2048, %s273, %s259, 128, 128, 8
        $region40: #{faster_block_pallas.1} parent=35 // pred_fallthru
          _
        // Predicated region
        $region41: #{faster_block_pallas.1} parent=35 // pred_check
          %p279 = pneg %p82
        $region42: #{faster_block_pallas.1} parent=35 // pred_check_branch
          %281 = sbr.rel (%p279) target = $region44
        $region43: #{faster_block_pallas.1} parent=35 // pred_region
          %s282 = sand.u32 %s72, 1
          %s283 = scalar_lea.sflag [#allocation7], %s282
          %s284 = sand.u32 %s72, 1
          %s285 = smul.addr %s284, 256
          %s286 = scalar_lea.vmem [#allocation6], %s285
          %s288 = ssub.s32 4096, 4096
          %289 = vsyncadd %s283, %s288
          %s290 = smul.addr %s29, 32
          %s291 = smul.addr %s290, 128
          %s292 = scalar_lea.hbm %s1, %s291
          %s293 = sshll.u32 %s286, 4
          %s294 = int_to_ptr.vmem [resolvable:$true] %s293
          %299 = dma.hbm_to_vmem [thread:$0]  %s292, 4096, %s294, %s283, 128, 128, 8
        $region44: #{faster_block_pallas.1} parent=35 // pred_fallthru
          _
      $region36: #{faster_block_pallas.1} parent=5 // pred_fallthru
        _
      %p300 = scmp.le.s32.totalorder 1, %s22
      %p301 = scmp.lt.s32.totalorder %s22, 5
      %p302 = pnand %p300, %p301
      %p303 = pneg %p302
      // Predicated region
      $region45: #{faster_block_pallas.1} parent=5 // pred_check
        _
      $region46: #{faster_block_pallas.1} parent=5 // pred_check_branch
        %305 = sbr.rel (%p302) target = $region48
      $region47: #{faster_block_pallas.1} parent=5 // pred_region
        %s306 = ssub.s32 %s22, 1
        %s307 = sand.u32 %s49, 1
        %s308 = scalar_lea.sflag [#allocation4], %s307
        %s309 = sand.u32 %s49, 1
        %s310 = smul.addr %s309, 128
        %s311 = scalar_lea.vmem [#allocation3], %s310
        // Predicated region
        $region49: #{faster_block_pallas.1} parent=47 // pred_check
          %p312 = pneg %p62
        $region50: #{faster_block_pallas.1} parent=47 // pred_check_branch
          %314 = sbr.rel (%p312) target = $region52
        $region51: #{faster_block_pallas.1} parent=47 // pred_region
          %315 = dma.done %s308, 2048
        $region52: #{faster_block_pallas.1} parent=47 // pred_fallthru
          _
        %s316 = sand.u32 %s75, 1
        %s317 = scalar_lea.sflag [#allocation7], %s316
        %s318 = sand.u32 %s75, 1
        %s319 = smul.addr %s318, 256
        %s320 = scalar_lea.vmem [#allocation6], %s319
        // Predicated region
        $region53: #{faster_block_pallas.1} parent=47 // pred_check
          %p321 = pneg %p88
        $region54: #{faster_block_pallas.1} parent=47 // pred_check_branch
          %323 = sbr.rel (%p321) target = $region56
        $region55: #{faster_block_pallas.1} parent=47 // pred_region
          %324 = dma.done %s317, 4096
        $region56: #{faster_block_pallas.1} parent=47 // pred_fallthru
          _
        %s325 = sand.u32 %s49, 1
        %s326 = scalar_lea.sflag [#allocation4], %s325
        %s327 = sand.u32 %s49, 1
        %s328 = smul.addr %s327, 128
        %s329 = scalar_lea.vmem [#allocation3], %s328
        %p330 = pneg %p62
        %p331 = pneg %p59
        %s332 = sand.u32 %s75, 1
        %s333 = scalar_lea.sflag [#allocation7], %s332
        %s334 = sand.u32 %s75, 1
        %s335 = smul.addr %s334, 256
        %s336 = scalar_lea.vmem [#allocation6], %s335
        %p337 = pneg %p88
        %p338 = pneg %p85
        %p339 = pneg %p109
        %p340 = pneg %p106
        %p341 = pneg %p130
        %p342 = pneg %p127
        %p343 = pneg %p151
        %p344 = pneg %p148
        %p345 = pneg %p172
        %p346 = pneg %p169
        %p347 = pneg %p193
        %p348 = pneg %p190
        %p349 = pneg %p221
        %p350 = pneg %p218
        %s351 = sand.u32 %s208, 1
        %s352 = scalar_lea.sflag [#allocation5], %s351
        %s353 = sand.u32 %s208, 1
        %s354 = smul.addr %s353, 128
        %s355 = scalar_lea.vmem [#allocation8], %s354
        %s356 = smul.u32 8, %s32
        %s357 = smul.u32 8, %s32
        %p359 = scmp.eq.s32.totalorder %s32, 0
        // Predicated region
        $region57: #{faster_block_pallas.1} parent=47 // pred_check
          %p360 = pneg %p359
        $region58: #{faster_block_pallas.1} parent=47 // pred_check_branch
          %362 = sbr.rel (%p360) target = $region60
        $region59: #{faster_block_pallas.1} parent=47 // pred_region
          %vm363 = vcmask 31744
          %364 = vst.msk [vmem:[#allocation2] sm:$0xff] %vm363, 0.0
          %365 = vst.msk [vmem:[#allocation2 + $0x8] sm:$0xff] %vm363, 0.0
          %vm366 = vcmask 25600
          %367 = vst.msk [vmem:[#allocation2 + $0x10] sm:$0x3] %vm366, 0.0
          %s368 = scalar_lea.vmem [#allocation2], 408
          %369 = vst.msk [vmem:[%s368] sm:$0xff] %vm363, 0.0
          %370 = vst.msk [vmem:[%s368 + $0x8] sm:$0xff] %vm363, 0.0
          %371 = vst.msk [vmem:[%s368 + $0x10] sm:$0x3] %vm366, 0.0
          %vm372 = vcmask 24576
          %373 = vst.msk [vmem:[#allocation2] sm:$0x1] %vm372, 0.0
          %374 = vst.msk [vmem:[#allocation2 + $0x18] sm:$0x1] %vm372, 0.0
          %375 = vst.msk [vmem:[#allocation2 + $0x30] sm:$0x1] %vm372, 0.0
          %376 = vst.msk [vmem:[#allocation2 + $0x48] sm:$0x1] %vm372, 0.0
          %377 = vst.msk [vmem:[#allocation2 + $0x60] sm:$0x1] %vm372, 0.0
          %378 = vst.msk [vmem:[#allocation2 + $0x78] sm:$0x1] %vm372, 0.0
          %379 = vst.msk [vmem:[#allocation2 + $0x90] sm:$0x1] %vm372, 0.0
          %380 = vst.msk [vmem:[#allocation2 + $0xa8] sm:$0x1] %vm372, 0.0
          %381 = vst.msk [vmem:[#allocation2 + $0xc0] sm:$0x1] %vm372, 0.0
          %382 = vst.msk [vmem:[#allocation2 + $0xd8] sm:$0x1] %vm372, 0.0
          %383 = vst.msk [vmem:[#allocation2 + $0xf0] sm:$0x1] %vm372, 0.0
          %384 = vst.msk [vmem:[#allocation2 + $0x108] sm:$0x1] %vm372, 0.0
          %385 = vst.msk [vmem:[#allocation2 + $0x120] sm:$0x1] %vm372, 0.0
          %386 = vst.msk [vmem:[#allocation2 + $0x138] sm:$0x1] %vm372, 0.0
          %387 = vst.msk [vmem:[#allocation2 + $0x150] sm:$0x1] %vm372, 0.0
          %388 = vst.msk [vmem:[#allocation2 + $0x168] sm:$0x1] %vm372, 0.0
          %389 = vst.msk [vmem:[#allocation2 + $0x180] sm:$0x1] %vm372, 0.0
          %390 = vst.msk [vmem:[#allocation2 + $0x198] sm:$0x1] %vm372, 0.0
          %391 = vst.msk [vmem:[#allocation2 + $0x11] sm:$0x1] %vm372, 0.0
          %392 = vst.msk [vmem:[#allocation2 + $0x29] sm:$0x1] %vm372, 0.0
          %393 = vst.msk [vmem:[#allocation2 + $0x41] sm:$0x1] %vm372, 0.0
          %394 = vst.msk [vmem:[#allocation2 + $0x59] sm:$0x1] %vm372, 0.0
          %395 = vst.msk [vmem:[#allocation2 + $0x71] sm:$0x1] %vm372, 0.0
          %396 = vst.msk [vmem:[#allocation2 + $0x89] sm:$0x1] %vm372, 0.0
          %397 = vst.msk [vmem:[#allocation2 + $0xa1] sm:$0x1] %vm372, 0.0
          %398 = vst.msk [vmem:[#allocation2 + $0xb9] sm:$0x1] %vm372, 0.0
          %399 = vst.msk [vmem:[#allocation2 + $0xd1] sm:$0x1] %vm372, 0.0
          %400 = vst.msk [vmem:[#allocation2 + $0xe9] sm:$0x1] %vm372, 0.0
          %401 = vst.msk [vmem:[#allocation2 + $0x101] sm:$0x1] %vm372, 0.0
          %402 = vst.msk [vmem:[#allocation2 + $0x119] sm:$0x1] %vm372, 0.0
          %403 = vst.msk [vmem:[#allocation2 + $0x131] sm:$0x1] %vm372, 0.0
          %404 = vst.msk [vmem:[#allocation2 + $0x149] sm:$0x1] %vm372, 0.0
          %405 = vst.msk [vmem:[#allocation2 + $0x161] sm:$0x1] %vm372, 0.0
          %406 = vst.msk [vmem:[#allocation2 + $0x179] sm:$0x1] %vm372, 0.0
          %407 = vst.msk [vmem:[#allocation2 + $0x191] sm:$0x1] %vm372, 0.0
          %408 = vst.msk [vmem:[#allocation2 + $0x1a9] sm:$0x1] %vm372, 0.0
          %v409 = vld [vmem:[%s320] sm:$0xff]
          %v410 = vld [vmem:[%s320 + $0x8] sm:$0xff]
          %v411 = vld [vmem:[%s320 + $0x10] sm:$0xff]
          %v412 = vld [vmem:[%s320 + $0x18] sm:$0xff]
          %v413 = vld [vmem:[%s320 + $0x20] sm:$0xff]
          %v414 = vld [vmem:[%s320 + $0x28] sm:$0xff]
          %v415 = vld [vmem:[%s320 + $0x30] sm:$0xff]
          %v416 = vld [vmem:[%s320 + $0x38] sm:$0xff]
          %v417 = vld [vmem:[%s320 + $0x40] sm:$0xff]
          %v418 = vld [vmem:[%s320 + $0x48] sm:$0xff]
          %v419 = vld [vmem:[%s320 + $0x50] sm:$0xff]
          %v420 = vld [vmem:[%s320 + $0x58] sm:$0xff]
          %v421 = vld [vmem:[%s320 + $0x60] sm:$0xff]
          %v422 = vld [vmem:[%s320 + $0x68] sm:$0xff]
          %v423 = vld [vmem:[%s320 + $0x70] sm:$0xff]
          %v424 = vld [vmem:[%s320 + $0x78] sm:$0xff]
          %v425 = vld [vmem:[%s320 + $0x80] sm:$0xff]
          %v426 = vld [vmem:[%s320 + $0x88] sm:$0xff]
          %v427 = vld [vmem:[%s320 + $0x90] sm:$0xff]
          %v428 = vld [vmem:[%s320 + $0x98] sm:$0xff]
          %v429 = vld [vmem:[%s320 + $0xa0] sm:$0xff]
          %v430 = vld [vmem:[%s320 + $0xa8] sm:$0xff]
          %v431 = vld [vmem:[%s320 + $0xb0] sm:$0xff]
          %v432 = vld [vmem:[%s320 + $0xb8] sm:$0xff]
          %v433 = vld [vmem:[%s320 + $0xc0] sm:$0xff]
          %v434 = vld [vmem:[%s320 + $0xc8] sm:$0xff]
          %v435 = vld [vmem:[%s320 + $0xd0] sm:$0xff]
          %v436 = vld [vmem:[%s320 + $0xd8] sm:$0xff]
          %v437 = vld [vmem:[%s320 + $0xe0] sm:$0xff]
          %v438 = vld [vmem:[%s320 + $0xe8] sm:$0xff]
          %v439 = vld [vmem:[%s320 + $0xf0] sm:$0xff]
          %v440 = vld [vmem:[%s320 + $0xf8] sm:$0xff]
          %s441 = scalar_lea.vmem [#allocation2], 24
          %442 = vst.msk [vmem:[%s441 + $0x1] sm:$0xff] %vm363, %v409
          %443 = vst.msk [vmem:[%s441 + $0x9] sm:$0xff] %vm363, %v410
          %444 = vst.msk [vmem:[%s441 + $0x19] sm:$0xff] %vm363, %v411
          %445 = vst.msk [vmem:[%s441 + $0x21] sm:$0xff] %vm363, %v412
          %446 = vst.msk [vmem:[%s441 + $0x31] sm:$0xff] %vm363, %v413
          %447 = vst.msk [vmem:[%s441 + $0x39] sm:$0xff] %vm363, %v414
          %448 = vst.msk [vmem:[%s441 + $0x49] sm:$0xff] %vm363, %v415
          %449 = vst.msk [vmem:[%s441 + $0x51] sm:$0xff] %vm363, %v416
          %450 = vst.msk [vmem:[%s441 + $0x61] sm:$0xff] %vm363, %v417
          %451 = vst.msk [vmem:[%s441 + $0x69] sm:$0xff] %vm363, %v418
          %452 = vst.msk [vmem:[%s441 + $0x79] sm:$0xff] %vm363, %v419
          %453 = vst.msk [vmem:[%s441 + $0x81] sm:$0xff] %vm363, %v420
          %454 = vst.msk [vmem:[%s441 + $0x91] sm:$0xff] %vm363, %v421
          %455 = vst.msk [vmem:[%s441 + $0x99] sm:$0xff] %vm363, %v422
          %456 = vst.msk [vmem:[%s441 + $0xa9] sm:$0xff] %vm363, %v423
          %457 = vst.msk [vmem:[%s441 + $0xb1] sm:$0xff] %vm363, %v424
          %458 = vst.msk [vmem:[%s441 + $0xc1] sm:$0xff] %vm363, %v425
          %459 = vst.msk [vmem:[%s441 + $0xc9] sm:$0xff] %vm363, %v426
          %460 = vst.msk [vmem:[%s441 + $0xd9] sm:$0xff] %vm363, %v427
          %461 = vst.msk [vmem:[%s441 + $0xe1] sm:$0xff] %vm363, %v428
          %462 = vst.msk [vmem:[%s441 + $0xf1] sm:$0xff] %vm363, %v429
          %463 = vst.msk [vmem:[%s441 + $0xf9] sm:$0xff] %vm363, %v430
          %464 = vst.msk [vmem:[%s441 + $0x109] sm:$0xff] %vm363, %v431
          %465 = vst.msk [vmem:[%s441 + $0x111] sm:$0xff] %vm363, %v432
          %466 = vst.msk [vmem:[%s441 + $0x121] sm:$0xff] %vm363, %v433
          %467 = vst.msk [vmem:[%s441 + $0x129] sm:$0xff] %vm363, %v434
          %468 = vst.msk [vmem:[%s441 + $0x139] sm:$0xff] %vm363, %v435
          %469 = vst.msk [vmem:[%s441 + $0x141] sm:$0xff] %vm363, %v436
          %470 = vst.msk [vmem:[%s441 + $0x151] sm:$0xff] %vm363, %v437
          %471 = vst.msk [vmem:[%s441 + $0x159] sm:$0xff] %vm363, %v438
          %472 = vst.msk [vmem:[%s441 + $0x169] sm:$0xff] %vm363, %v439
          %473 = vst.msk [vmem:[%s441 + $0x171] sm:$0xff] %vm363, %v440
        $region60: #{faster_block_pallas.1} parent=47 // pred_fallthru
          _
        %v474 = vld [vmem:[%s311] sm:$0xff]
        %v475 = vld [vmem:[%s311 + $0x8] sm:$0xff]
        %v476 = vld [vmem:[%s311 + $0x10] sm:$0xff]
        %v477 = vld [vmem:[%s311 + $0x18] sm:$0xff]
        %v478 = vld [vmem:[%s311 + $0x20] sm:$0xff]
        %v479 = vld [vmem:[%s311 + $0x28] sm:$0xff]
        %v480 = vld [vmem:[%s311 + $0x30] sm:$0xff]
        %v481 = vld [vmem:[%s311 + $0x38] sm:$0xff]
        %v482 = vld [vmem:[%s311 + $0x40] sm:$0xff]
        %v483 = vld [vmem:[%s311 + $0x48] sm:$0xff]
        %v484 = vld [vmem:[%s311 + $0x50] sm:$0xff]
        %v485 = vld [vmem:[%s311 + $0x58] sm:$0xff]
        %v486 = vld [vmem:[%s311 + $0x60] sm:$0xff]
        %v487 = vld [vmem:[%s311 + $0x68] sm:$0xff]
        %v488 = vld [vmem:[%s311 + $0x70] sm:$0xff]
        %v489 = vld [vmem:[%s311 + $0x78] sm:$0xff]
        %v490 = vpack.c.bf16 %v475, %v474
        %v491 = vpack.c.bf16 %v477, %v476
        %v492 = vpack.c.bf16 %v479, %v478
        %v493 = vpack.c.bf16 %v481, %v480
        %v494 = vpack.c.bf16 %v483, %v482
        %v495 = vpack.c.bf16 %v485, %v484
        %v496 = vpack.c.bf16 %v487, %v486
        %v497 = vpack.c.bf16 %v489, %v488
        %v498 = vld [vmem:[%s3] sm:$0xf]
        %v499 = vld [vmem:[%s3 + $0x4] sm:$0xf]
        %s500 = smul.u32 %s32, 8
        %s501 = smul.u32 %s500, 24
        %s502 = scalar_lea.vmem [#allocation2], %s501
        %v503 = vld [vmem:[%s502] sm:$0xff]
        %v504 = vld [vmem:[%s502 + $0x8] sm:$0xff]
        %v505 = vld [vmem:[%s502 + $0x18] sm:$0xff]
        %v506 = vld [vmem:[%s502 + $0x20] sm:$0xff]
        %v507 = vld [vmem:[%s502 + $0x30] sm:$0xff]
        %v508 = vld [vmem:[%s502 + $0x38] sm:$0xff]
        %v509 = vld [vmem:[%s502 + $0x48] sm:$0xff]
        %v510 = vld [vmem:[%s502 + $0x50] sm:$0xff]
        %v511 = vld [vmem:[%s502 + $0x60] sm:$0xff]
        %v512 = vld [vmem:[%s502 + $0x68] sm:$0xff]
        %v513 = vld [vmem:[%s502 + $0x78] sm:$0xff]
        %v514 = vld [vmem:[%s502 + $0x80] sm:$0xff]
        %v515 = vld [vmem:[%s502 + $0x90] sm:$0xff]
        %v516 = vld [vmem:[%s502 + $0x98] sm:$0xff]
        %v517 = vld [vmem:[%s502 + $0xa8] sm:$0xff]
        %v518 = vld [vmem:[%s502 + $0xb0] sm:$0xff]
        %v519 = vpack.c.bf16 %v504, %v503
        %v520 = vpack.c.bf16 %v506, %v505
        %v521 = vpack.c.bf16 %v508, %v507
        %v522 = vpack.c.bf16 %v510, %v509
        %v523 = vpack.c.bf16 %v512, %v511
        %v524 = vpack.c.bf16 %v514, %v513
        %v525 = vpack.c.bf16 %v516, %v515
        %v526 = vpack.c.bf16 %v518, %v517
        %v527 = vld [vmem:[%s2] sm:$0x3]
        %vm528 = vcmask 31744
        %v530 = vsel %vm528, %v519, 0
        %v533 = vsel %vm528, %v520, 0
        %v536 = vsel %vm528, %v521, 0
        %v539 = vsel %vm528, %v522, 0
        %v542 = vsel %vm528, %v523, 0
        %v545 = vsel %vm528, %v524, 0
        %v548 = vsel %vm528, %v525, 0
        %v551 = vsel %vm528, %v526, 0
        %vm553 = vcmask 1041408
        %v555 = vsel %vm553, %v527, 0
        %557 = vmatprep.subr.bf16.mxu0 0
        %558 = vmatpush1.bf16.msra.mxu0 %v555
        %559 = vmatprep.subr.bf16.mxu0 0
        %560 = vmatpush1.bf16.msra.mxu0 0
        %561 = vmatprep.subr.bf16.mxu0 0
        %562 = vmatpush1.bf16.msra.mxu0 0
        %563 = vmatprep.subr.bf16.mxu0 0
        %564 = vmatpush1.bf16.msra.mxu0 0
        %565 = vmatprep.subr.bf16.mxu0 0
        %566 = vmatpush1.bf16.msra.mxu0 0
        %567 = vmatprep.subr.bf16.mxu0 0
        %568 = vmatpush1.bf16.msra.mxu0 0
        %569 = vmatprep.subr.bf16.mxu0 0
        %570 = vmatpush1.bf16.msra.mxu0 0
        %571 = vmatprep.subr.bf16.mxu0 0
        %572 = vmatpush1.bf16.msra.mxu0 0
        %573 = vmatprep.subr.bf16.mxu0 0
        %574 = vmatpush1.bf16.msra.mxu0 0
        %575 = vmatprep.subr.bf16.mxu0 0
        %576 = vmatpush1.bf16.msra.mxu0 0
        %577 = vmatprep.subr.bf16.mxu0 0
        %578 = vmatpush1.bf16.msra.mxu0 0
        %579 = vmatprep.subr.bf16.mxu0 0
        %580 = vmatpush1.bf16.msra.mxu0 0
        %581 = vmatprep.subr.bf16.mxu0 0
        %582 = vmatpush1.bf16.msra.mxu0 0
        %583 = vmatprep.subr.bf16.mxu0 0
        %584 = vmatpush1.bf16.msra.mxu0 0
        %585 = vmatprep.subr.bf16.mxu0 0
        %586 = vmatpush1.bf16.msra.mxu0 0
        %587 = vmatprep.subr.bf16.mxu0 0
        %588 = vmatpush1.bf16.msra.mxu0 0
        %589 = vmatprep.mubr.bf16.mxu0 0
        %590 = vmatmul.mubr.bf16.gmra.mrb[0].mxu0 %v530
        %v591 = vpop.f32.mrb[0].mxu0
        %v592 = vadd.f32 0.0, %v591
        %v593 = vpop.f32.mrb[0].mxu0
        %v594 = vpop.f32.mrb[0].mxu0
        %v595 = vadd.f32 0.0, %v594
        %v596 = vpop.f32.mrb[0].mxu0
        %597 = vmatprep.mubr.bf16.mxu0 0
        %598 = vmatmul.mubr.bf16.gmra.mrb[0].mxu0 %v533
        %v599 = vpop.f32.mrb[0].mxu0
        %v600 = vadd.f32 0.0, %v599
        %v601 = vpop.f32.mrb[0].mxu0
        %v602 = vpop.f32.mrb[0].mxu0
        %v603 = vadd.f32 0.0, %v602
        %v604 = vpop.f32.mrb[0].mxu0
        %605 = vmatprep.mubr.bf16.mxu0 0
        %606 = vmatmul.mubr.bf16.gmra.mrb[0].mxu0 %v536
        %v607 = vpop.f32.mrb[0].mxu0
        %v608 = vadd.f32 0.0, %v607
        %v609 = vpop.f32.mrb[0].mxu0
        %v610 = vpop.f32.mrb[0].mxu0
        %v611 = vadd.f32 0.0, %v610
        %v612 = vpop.f32.mrb[0].mxu0
        %613 = vmatprep.mubr.bf16.mxu0 0
        %614 = vmatmul.mubr.bf16.gmra.mrb[0].mxu0 %v539
        %v615 = vpop.f32.mrb[0].mxu0
        %v616 = vadd.f32 0.0, %v615
        %v617 = vpop.f32.mrb[0].mxu0
        %v618 = vpop.f32.mrb[0].mxu0
        %v619 = vadd.f32 0.0, %v618
        %v620 = vpop.f32.mrb[0].mxu0
        %621 = vmatprep.mubr.bf16.mxu0 0
        %622 = vmatmul.mubr.bf16.gmra.mrb[0].mxu0 %v542
        %v623 = vpop.f32.mrb[0].mxu0
        %v624 = vadd.f32 0.0, %v623
        %v625 = vpop.f32.mrb[0].mxu0
        %v626 = vpop.f32.mrb[0].mxu0
        %v627 = vadd.f32 0.0, %v626
        %v628 = vpop.f32.mrb[0].mxu0
        %629 = vmatprep.mubr.bf16.mxu0 0
        %630 = vmatmul.mubr.bf16.gmra.mrb[0].mxu0 %v545
        %v631 = vpop.f32.mrb[0].mxu0
        %v632 = vadd.f32 0.0, %v631
        %v633 = vpop.f32.mrb[0].mxu0
        %v634 = vpop.f32.mrb[0].mxu0
        %v635 = vadd.f32 0.0, %v634
        %v636 = vpop.f32.mrb[0].mxu0
        %637 = vmatprep.mubr.bf16.mxu0 0
        %638 = vmatmul.mubr.bf16.gmra.mrb[0].mxu0 %v548
        %v639 = vpop.f32.mrb[0].mxu0
        %v640 = vadd.f32 0.0, %v639
        %v641 = vpop.f32.mrb[0].mxu0
        %v642 = vpop.f32.mrb[0].mxu0
        %v643 = vadd.f32 0.0, %v642
        %v644 = vpop.f32.mrb[0].mxu0
        %645 = vmatprep.mubr.bf16.mxu0 0
        %646 = vmatmul.mubr.bf16.gmra.mrb[0].mxu0 %v551
        %v647 = vpop.f32.mrb[0].mxu0
        %v648 = vadd.f32 0.0, %v647
        %v649 = vpop.f32.mrb[0].mxu0
        %v650 = vpop.f32.mrb[0].mxu0
        %v651 = vadd.f32 0.0, %v650
        %v652 = vpop.f32.mrb[0].mxu0
        %653 = vdwg.mxu0
        %v656 = vunpack.c.l.b16 %v498
        %v657 = vunpack.c.l.b16 %v499
        %v658 = vpack.c.b16 %v657, %v656
        %vm660 = vcmask 130048
        %v662 = vsel %vm660, %v490, 0
        %v665 = vsel %vm660, %v491, 0
        %v668 = vsel %vm660, %v492, 0
        %v671 = vsel %vm660, %v493, 0
        %v674 = vsel %vm660, %v494, 0
        %v677 = vsel %vm660, %v495, 0
        %v680 = vsel %vm660, %v496, 0
        %v683 = vsel %vm660, %v497, 0
        %685 = vmatprep.subr.bf16.mxu0 0
        %686 = vmatpush1.bf16.msra.mxu0 %v658
        %687 = vmatprep.subr.bf16.mxu0 0
        %688 = vmatpush1.bf16.msra.mxu0 0
        %689 = vmatprep.subr.bf16.mxu0 0
        %690 = vmatpush1.bf16.msra.mxu0 0
        %691 = vmatprep.subr.bf16.mxu0 0
        %692 = vmatpush1.bf16.msra.mxu0 0
        %693 = vmatprep.subr.bf16.mxu0 0
        %694 = vmatpush1.bf16.msra.mxu0 0
        %695 = vmatprep.subr.bf16.mxu0 0
        %696 = vmatpush1.bf16.msra.mxu0 0
        %697 = vmatprep.subr.bf16.mxu0 0
        %698 = vmatpush1.bf16.msra.mxu0 0
        %699 = vmatprep.subr.bf16.mxu0 0
        %700 = vmatpush1.bf16.msra.mxu0 0
        %701 = vmatprep.subr.bf16.mxu0 0
        %702 = vmatpush1.bf16.msra.mxu0 0
        %703 = vmatprep.subr.bf16.mxu0 0
        %704 = vmatpush1.bf16.msra.mxu0 0
        %705 = vmatprep.subr.bf16.mxu0 0
        %706 = vmatpush1.bf16.msra.mxu0 0
        %707 = vmatprep.subr.bf16.mxu0 0
        %708 = vmatpush1.bf16.msra.mxu0 0
        %709 = vmatprep.subr.bf16.mxu0 0
        %710 = vmatpush1.bf16.msra.mxu0 0
        %711 = vmatprep.subr.bf16.mxu0 0
        %712 = vmatpush1.bf16.msra.mxu0 0
        %713 = vmatprep.subr.bf16.mxu0 0
        %714 = vmatpush1.bf16.msra.mxu0 0
        %715 = vmatprep.subr.bf16.mxu0 0
        %716 = vmatpush1.bf16.msra.mxu0 0
        %717 = vmatprep.mubr.bf16.mxu0 0
        %718 = vmatmul.mubr.bf16.gmra.mrb[0].mxu0 %v662
        %v719 = vpop.f32.mrb[0].mxu0
        %v720 = vadd.f32 %v592, %v719
        %v721 = vpop.f32.mrb[0].mxu0
        %v722 = vpop.f32.mrb[0].mxu0
        %v723 = vadd.f32 %v595, %v722
        %v724 = vpop.f32.mrb[0].mxu0
        %725 = vmatprep.mubr.bf16.mxu0 0
        %726 = vmatmul.mubr.bf16.gmra.mrb[0].mxu0 %v665
        %v727 = vpop.f32.mrb[0].mxu0
        %v728 = vadd.f32 %v600, %v727
        %v729 = vpop.f32.mrb[0].mxu0
        %v730 = vpop.f32.mrb[0].mxu0
        %v731 = vadd.f32 %v603, %v730
        %v732 = vpop.f32.mrb[0].mxu0
        %733 = vmatprep.mubr.bf16.mxu0 0
        %734 = vmatmul.mubr.bf16.gmra.mrb[0].mxu0 %v668
        %v735 = vpop.f32.mrb[0].mxu0
        %v736 = vadd.f32 %v608, %v735
        %v737 = vpop.f32.mrb[0].mxu0
        %v738 = vpop.f32.mrb[0].mxu0
        %v739 = vadd.f32 %v611, %v738
        %v740 = vpop.f32.mrb[0].mxu0
        %741 = vmatprep.mubr.bf16.mxu0 0
        %742 = vmatmul.mubr.bf16.gmra.mrb[0].mxu0 %v671
        %v743 = vpop.f32.mrb[0].mxu0
        %v744 = vadd.f32 %v616, %v743
        %v745 = vpop.f32.mrb[0].mxu0
        %v746 = vpop.f32.mrb[0].mxu0
        %v747 = vadd.f32 %v619, %v746
        %v748 = vpop.f32.mrb[0].mxu0
        %749 = vmatprep.mubr.bf16.mxu0 0
        %750 = vmatmul.mubr.bf16.gmra.mrb[0].mxu0 %v674
        %v751 = vpop.f32.mrb[0].mxu0
        %v752 = vadd.f32 %v624, %v751
        %v753 = vpop.f32.mrb[0].mxu0
        %v754 = vpop.f32.mrb[0].mxu0
        %v755 = vadd.f32 %v627, %v754
        %v756 = vpop.f32.mrb[0].mxu0
        %757 = vmatprep.mubr.bf16.mxu0 0
        %758 = vmatmul.mubr.bf16.gmra.mrb[0].mxu0 %v677
        %v759 = vpop.f32.mrb[0].mxu0
        %v760 = vadd.f32 %v632, %v759
        %v761 = vpop.f32.mrb[0].mxu0
        %v762 = vpop.f32.mrb[0].mxu0
        %v763 = vadd.f32 %v635, %v762
        %v764 = vpop.f32.mrb[0].mxu0
        %765 = vmatprep.mubr.bf16.mxu0 0
        %766 = vmatmul.mubr.bf16.gmra.mrb[0].mxu0 %v680
        %v767 = vpop.f32.mrb[0].mxu0
        %v768 = vadd.f32 %v640, %v767
        %v769 = vpop.f32.mrb[0].mxu0
        %v770 = vpop.f32.mrb[0].mxu0
        %v771 = vadd.f32 %v643, %v770
        %v772 = vpop.f32.mrb[0].mxu0
        %773 = vmatprep.mubr.bf16.mxu0 0
        %774 = vmatmul.mubr.bf16.gmra.mrb[0].mxu0 %v683
        %v775 = vpop.f32.mrb[0].mxu0
        %v776 = vadd.f32 %v648, %v775
        %v777 = vpop.f32.mrb[0].mxu0
        %v778 = vpop.f32.mrb[0].mxu0
        %v779 = vadd.f32 %v651, %v778
        %v780 = vpop.f32.mrb[0].mxu0
        %781 = vdwg.mxu0
        %v782 = vld [vmem:[%s502 + $0x1] sm:$0xff]
        %v783 = vld [vmem:[%s502 + $0x9] sm:$0xff]
        %v784 = vld [vmem:[%s502 + $0x19] sm:$0xff]
        %v785 = vld [vmem:[%s502 + $0x21] sm:$0xff]
        %v786 = vld [vmem:[%s502 + $0x31] sm:$0xff]
        %v787 = vld [vmem:[%s502 + $0x39] sm:$0xff]
        %v788 = vld [vmem:[%s502 + $0x49] sm:$0xff]
        %v789 = vld [vmem:[%s502 + $0x51] sm:$0xff]
        %v790 = vld [vmem:[%s502 + $0x61] sm:$0xff]
        %v791 = vld [vmem:[%s502 + $0x69] sm:$0xff]
        %v792 = vld [vmem:[%s502 + $0x79] sm:$0xff]
        %v793 = vld [vmem:[%s502 + $0x81] sm:$0xff]
        %v794 = vld [vmem:[%s502 + $0x91] sm:$0xff]
        %v795 = vld [vmem:[%s502 + $0x99] sm:$0xff]
        %v796 = vld [vmem:[%s502 + $0xa9] sm:$0xff]
        %v797 = vld [vmem:[%s502 + $0xb1] sm:$0xff]
        %v798 = vpack.c.bf16 %v783, %v782
        %v799 = vpack.c.bf16 %v785, %v784
        %v800 = vpack.c.bf16 %v787, %v786
        %v801 = vpack.c.bf16 %v789, %v788
        %v802 = vpack.c.bf16 %v791, %v790
        %v803 = vpack.c.bf16 %v793, %v792
        %v804 = vpack.c.bf16 %v795, %v794
        %v805 = vpack.c.bf16 %v797, %v796
        %s806 = scalar_lea.vmem %s2, 2
        %v807 = vld [vmem:[%s806] sm:$0x3]
        %v809 = vsel %vm528, %v798, 0
        %v812 = vsel %vm528, %v799, 0
        %v815 = vsel %vm528, %v800, 0
        %v818 = vsel %vm528, %v801, 0
        %v821 = vsel %vm528, %v802, 0
        %v824 = vsel %vm528, %v803, 0
        %v827 = vsel %vm528, %v804, 0
        %v830 = vsel %vm528, %v805, 0
        %v833 = vsel %vm553, %v807, 0
        %835 = vmatprep.subr.bf16.mxu0 0
        %836 = vmatpush1.bf16.msra.mxu0 %v833
        %837 = vmatprep.subr.bf16.mxu0 0
        %838 = vmatpush1.bf16.msra.mxu0 0
        %839 = vmatprep.subr.bf16.mxu0 0
        %840 = vmatpush1.bf16.msra.mxu0 0
        %841 = vmatprep.subr.bf16.mxu0 0
        %842 = vmatpush1.bf16.msra.mxu0 0
        %843 = vmatprep.subr.bf16.mxu0 0
        %844 = vmatpush1.bf16.msra.mxu0 0
        %845 = vmatprep.subr.bf16.mxu0 0
        %846 = vmatpush1.bf16.msra.mxu0 0
        %847 = vmatprep.subr.bf16.mxu0 0
        %848 = vmatpush1.bf16.msra.mxu0 0
        %849 = vmatprep.subr.bf16.mxu0 0
        %850 = vmatpush1.bf16.msra.mxu0 0
        %851 = vmatprep.subr.bf16.mxu0 0
        %852 = vmatpush1.bf16.msra.mxu0 0
        %853 = vmatprep.subr.bf16.mxu0 0
        %854 = vmatpush1.bf16.msra.mxu0 0
        %855 = vmatprep.subr.bf16.mxu0 0
        %856 = vmatpush1.bf16.msra.mxu0 0
        %857 = vmatprep.subr.bf16.mxu0 0
        %858 = vmatpush1.bf16.msra.mxu0 0
        %859 = vmatprep.subr.bf16.mxu0 0
        %860 = vmatpush1.bf16.msra.mxu0 0
        %861 = vmatprep.subr.bf16.mxu0 0
        %862 = vmatpush1.bf16.msra.mxu0 0
        %863 = vmatprep.subr.bf16.mxu0 0
        %864 = vmatpush1.bf16.msra.mxu0 0
        %865 = vmatprep.subr.bf16.mxu0 0
        %866 = vmatpush1.bf16.msra.mxu0 0
        %867 = vmatprep.mubr.bf16.mxu0 0
        %868 = vmatmul.mubr.bf16.gmra.mrb[0].mxu0 %v809
        %v869 = vpop.f32.mrb[0].mxu0
        %v870 = vadd.f32 0.0, %v869
        %v871 = vpop.f32.mrb[0].mxu0
        %v872 = vpop.f32.mrb[0].mxu0
        %v873 = vadd.f32 0.0, %v872
        %v874 = vpop.f32.mrb[0].mxu0
        %875 = vmatprep.mubr.bf16.mxu0 0
        %876 = vmatmul.mubr.bf16.gmra.mrb[0].mxu0 %v812
        %v877 = vpop.f32.mrb[0].mxu0
        %v878 = vadd.f32 0.0, %v877
        %v879 = vpop.f32.mrb[0].mxu0
        %v880 = vpop.f32.mrb[0].mxu0
        %v881 = vadd.f32 0.0, %v880
        %v882 = vpop.f32.mrb[0].mxu0
        %883 = vmatprep.mubr.bf16.mxu0 0
        %884 = vmatmul.mubr.bf16.gmra.mrb[0].mxu0 %v815
        %v885 = vpop.f32.mrb[0].mxu0
        %v886 = vadd.f32 0.0, %v885
        %v887 = vpop.f32.mrb[0].mxu0
        %v888 = vpop.f32.mrb[0].mxu0
        %v889 = vadd.f32 0.0, %v888
        %v890 = vpop.f32.mrb[0].mxu0
        %891 = vmatprep.mubr.bf16.mxu0 0
        %892 = vmatmul.mubr.bf16.gmra.mrb[0].mxu0 %v818
        %v893 = vpop.f32.mrb[0].mxu0
        %v894 = vadd.f32 0.0, %v893
        %v895 = vpop.f32.mrb[0].mxu0
        %v896 = vpop.f32.mrb[0].mxu0
        %v897 = vadd.f32 0.0, %v896
        %v898 = vpop.f32.mrb[0].mxu0
        %899 = vmatprep.mubr.bf16.mxu0 0
        %900 = vmatmul.mubr.bf16.gmra.mrb[0].mxu0 %v821
        %v901 = vpop.f32.mrb[0].mxu0
        %v902 = vadd.f32 0.0, %v901
        %v903 = vpop.f32.mrb[0].mxu0
        %v904 = vpop.f32.mrb[0].mxu0
        %v905 = vadd.f32 0.0, %v904
        %v906 = vpop.f32.mrb[0].mxu0
        %907 = vmatprep.mubr.bf16.mxu0 0
        %908 = vmatmul.mubr.bf16.gmra.mrb[0].mxu0 %v824
        %v909 = vpop.f32.mrb[0].mxu0
        %v910 = vadd.f32 0.0, %v909
        %v911 = vpop.f32.mrb[0].mxu0
        %v912 = vpop.f32.mrb[0].mxu0
        %v913 = vadd.f32 0.0, %v912
        %v914 = vpop.f32.mrb[0].mxu0
        %915 = vmatprep.mubr.bf16.mxu0 0
        %916 = vmatmul.mubr.bf16.gmra.mrb[0].mxu0 %v827
        %v917 = vpop.f32.mrb[0].mxu0
        %v918 = vadd.f32 0.0, %v917
        %v919 = vpop.f32.mrb[0].mxu0
        %v920 = vpop.f32.mrb[0].mxu0
        %v921 = vadd.f32 0.0, %v920
        %v922 = vpop.f32.mrb[0].mxu0
        %923 = vmatprep.mubr.bf16.mxu0 0
        %924 = vmatmul.mubr.bf16.gmra.mrb[0].mxu0 %v830
        %v925 = vpop.f32.mrb[0].mxu0
        %v926 = vadd.f32 0.0, %v925
        %v927 = vpop.f32.mrb[0].mxu0
        %v928 = vpop.f32.mrb[0].mxu0
        %v929 = vadd.f32 0.0, %v928
        %v930 = vpop.f32.mrb[0].mxu0
        %931 = vdwg.mxu0
        %v932 = vadd.f32 %v720, %v870
        %v933 = vadd.f32 %v723, %v873
        %v934 = vadd.f32 %v728, %v878
        %v935 = vadd.f32 %v731, %v881
        %v936 = vadd.f32 %v736, %v886
        %v937 = vadd.f32 %v739, %v889
        %v938 = vadd.f32 %v744, %v894
        %v939 = vadd.f32 %v747, %v897
        %v940 = vadd.f32 %v752, %v902
        %v941 = vadd.f32 %v755, %v905
        %v942 = vadd.f32 %v760, %v910
        %v943 = vadd.f32 %v763, %v913
        %v944 = vadd.f32 %v768, %v918
        %v945 = vadd.f32 %v771, %v921
        %v946 = vadd.f32 %v776, %v926
        %v947 = vadd.f32 %v779, %v929
        %v948 = vld [vmem:[%s502 + $0x2] sm:$0xff]
        %v949 = vld [vmem:[%s502 + $0xa] sm:$0xff]
        %v950 = vld [vmem:[%s502 + $0x1a] sm:$0xff]
        %v951 = vld [vmem:[%s502 + $0x22] sm:$0xff]
        %v952 = vld [vmem:[%s502 + $0x32] sm:$0xff]
        %v953 = vld [vmem:[%s502 + $0x3a] sm:$0xff]
        %v954 = vld [vmem:[%s502 + $0x4a] sm:$0xff]
        %v955 = vld [vmem:[%s502 + $0x52] sm:$0xff]
        %v956 = vld [vmem:[%s502 + $0x62] sm:$0xff]
        %v957 = vld [vmem:[%s502 + $0x6a] sm:$0xff]
        %v958 = vld [vmem:[%s502 + $0x7a] sm:$0xff]
        %v959 = vld [vmem:[%s502 + $0x82] sm:$0xff]
        %v960 = vld [vmem:[%s502 + $0x92] sm:$0xff]
        %v961 = vld [vmem:[%s502 + $0x9a] sm:$0xff]
        %v962 = vld [vmem:[%s502 + $0xaa] sm:$0xff]
        %v963 = vld [vmem:[%s502 + $0xb2] sm:$0xff]
        %v964 = vpack.c.bf16 %v949, %v948
        %v965 = vpack.c.bf16 %v951, %v950
        %v966 = vpack.c.bf16 %v953, %v952
        %v967 = vpack.c.bf16 %v955, %v954
        %v968 = vpack.c.bf16 %v957, %v956
        %v969 = vpack.c.bf16 %v959, %v958
        %v970 = vpack.c.bf16 %v961, %v960
        %v971 = vpack.c.bf16 %v963, %v962
        %s972 = scalar_lea.vmem %s2, 4
        %v973 = vld [vmem:[%s972] sm:$0x3]
        %v975 = vsel %vm528, %v964, 0
        %v978 = vsel %vm528, %v965, 0
        %v981 = vsel %vm528, %v966, 0
        %v984 = vsel %vm528, %v967, 0
        %v987 = vsel %vm528, %v968, 0
        %v990 = vsel %vm528, %v969, 0
        %v993 = vsel %vm528, %v970, 0
        %v996 = vsel %vm528, %v971, 0
        %v999 = vsel %vm553, %v973, 0
        %1001 = vmatprep.subr.bf16.mxu0 0
        %1002 = vmatpush1.bf16.msra.mxu0 %v999
        %1003 = vmatprep.subr.bf16.mxu0 0
        %1004 = vmatpush1.bf16.msra.mxu0 0
        %1005 = vmatprep.subr.bf16.mxu0 0
        %1006 = vmatpush1.bf16.msra.mxu0 0
        %1007 = vmatprep.subr.bf16.mxu0 0
        %1008 = vmatpush1.bf16.msra.mxu0 0
        %1009 = vmatprep.subr.bf16.mxu0 0
        %1010 = vmatpush1.bf16.msra.mxu0 0
        %1011 = vmatprep.subr.bf16.mxu0 0
        %1012 = vmatpush1.bf16.msra.mxu0 0
        %1013 = vmatprep.subr.bf16.mxu0 0
        %1014 = vmatpush1.bf16.msra.mxu0 0
        %1015 = vmatprep.subr.bf16.mxu0 0
        %1016 = vmatpush1.bf16.msra.mxu0 0
        %1017 = vmatprep.subr.bf16.mxu0 0
        %1018 = vmatpush1.bf16.msra.mxu0 0
        %1019 = vmatprep.subr.bf16.mxu0 0
        %1020 = vmatpush1.bf16.msra.mxu0 0
        %1021 = vmatprep.subr.bf16.mxu0 0
        %1022 = vmatpush1.bf16.msra.mxu0 0
        %1023 = vmatprep.subr.bf16.mxu0 0
        %1024 = vmatpush1.bf16.msra.mxu0 0
        %1025 = vmatprep.subr.bf16.mxu0 0
        %1026 = vmatpush1.bf16.msra.mxu0 0
        %1027 = vmatprep.subr.bf16.mxu0 0
        %1028 = vmatpush1.bf16.msra.mxu0 0
        %1029 = vmatprep.subr.bf16.mxu0 0
        %1030 = vmatpush1.bf16.msra.mxu0 0
        %1031 = vmatprep.subr.bf16.mxu0 0
        %1032 = vmatpush1.bf16.msra.mxu0 0
        %1033 = vmatprep.mubr.bf16.mxu0 0
        %1034 = vmatmul.mubr.bf16.gmra.mrb[0].mxu0 %v975
        %v1035 = vpop.f32.mrb[0].mxu0
        %v1036 = vadd.f32 0.0, %v1035
        %v1037 = vpop.f32.mrb[0].mxu0
        %v1038 = vpop.f32.mrb[0].mxu0
        %v1039 = vadd.f32 0.0, %v1038
        %v1040 = vpop.f32.mrb[0].mxu0
        %1041 = vmatprep.mubr.bf16.mxu0 0
        %1042 = vmatmul.mubr.bf16.gmra.mrb[0].mxu0 %v978
        %v1043 = vpop.f32.mrb[0].mxu0
        %v1044 = vadd.f32 0.0, %v1043
        %v1045 = vpop.f32.mrb[0].mxu0
        %v1046 = vpop.f32.mrb[0].mxu0
        %v1047 = vadd.f32 0.0, %v1046
        %v1048 = vpop.f32.mrb[0].mxu0
        %1049 = vmatprep.mubr.bf16.mxu0 0
        %1050 = vmatmul.mubr.bf16.gmra.mrb[0].mxu0 %v981
        %v1051 = vpop.f32.mrb[0].mxu0
        %v1052 = vadd.f32 0.0, %v1051
        %v1053 = vpop.f32.mrb[0].mxu0
        %v1054 = vpop.f32.mrb[0].mxu0
        %v1055 = vadd.f32 0.0, %v1054
        %v1056 = vpop.f32.mrb[0].mxu0
        %1057 = vmatprep.mubr.bf16.mxu0 0
        %1058 = vmatmul.mubr.bf16.gmra.mrb[0].mxu0 %v984
        %v1059 = vpop.f32.mrb[0].mxu0
        %v1060 = vadd.f32 0.0, %v1059
        %v1061 = vpop.f32.mrb[0].mxu0
        %v1062 = vpop.f32.mrb[0].mxu0
        %v1063 = vadd.f32 0.0, %v1062
        %v1064 = vpop.f32.mrb[0].mxu0
        %1065 = vmatprep.mubr.bf16.mxu0 0
        %1066 = vmatmul.mubr.bf16.gmra.mrb[0].mxu0 %v987
        %v1067 = vpop.f32.mrb[0].mxu0
        %v1068 = vadd.f32 0.0, %v1067
        %v1069 = vpop.f32.mrb[0].mxu0
        %v1070 = vpop.f32.mrb[0].mxu0
        %v1071 = vadd.f32 0.0, %v1070
        %v1072 = vpop.f32.mrb[0].mxu0
        %1073 = vmatprep.mubr.bf16.mxu0 0
        %1074 = vmatmul.mubr.bf16.gmra.mrb[0].mxu0 %v990
        %v1075 = vpop.f32.mrb[0].mxu0
        %v1076 = vadd.f32 0.0, %v1075
        %v1077 = vpop.f32.mrb[0].mxu0
        %v1078 = vpop.f32.mrb[0].mxu0
        %v1079 = vadd.f32 0.0, %v1078
        %v1080 = vpop.f32.mrb[0].mxu0
        %1081 = vmatprep.mubr.bf16.mxu0 0
        %1082 = vmatmul.mubr.bf16.gmra.mrb[0].mxu0 %v993
        %v1083 = vpop.f32.mrb[0].mxu0
        %v1084 = vadd.f32 0.0, %v1083
        %v1085 = vpop.f32.mrb[0].mxu0
        %v1086 = vpop.f32.mrb[0].mxu0
        %v1087 = vadd.f32 0.0, %v1086
        %v1088 = vpop.f32.mrb[0].mxu0
        %1089 = vmatprep.mubr.bf16.mxu0 0
        %1090 = vmatmul.mubr.bf16.gmra.mrb[0].mxu0 %v996
        %v1091 = vpop.f32.mrb[0].mxu0
        %v1092 = vadd.f32 0.0, %v1091
        %v1093 = vpop.f32.mrb[0].mxu0
        %v1094 = vpop.f32.mrb[0].mxu0
        %v1095 = vadd.f32 0.0, %v1094
        %v1096 = vpop.f32.mrb[0].mxu0
        %1097 = vdwg.mxu0
        %v1098 = vadd.f32 %v932, %v1036
        %v1099 = vadd.f32 %v933, %v1039
        %v1100 = vadd.f32 %v934, %v1044
        %v1101 = vadd.f32 %v935, %v1047
        %v1102 = vadd.f32 %v936, %v1052
        %v1103 = vadd.f32 %v937, %v1055
        %v1104 = vadd.f32 %v938, %v1060
        %v1105 = vadd.f32 %v939, %v1063
        %v1106 = vadd.f32 %v940, %v1068
        %v1107 = vadd.f32 %v941, %v1071
        %v1108 = vadd.f32 %v942, %v1076
        %v1109 = vadd.f32 %v943, %v1079
        %v1110 = vadd.f32 %v944, %v1084
        %v1111 = vadd.f32 %v945, %v1087
        %v1112 = vadd.f32 %v946, %v1092
        %v1113 = vadd.f32 %v947, %v1095
        %s1114 = sadd.s32 %s500, 1
        %s1115 = smul.u32 %s1114, 24
        %s1116 = scalar_lea.vmem [#allocation2], %s1115
        %v1117 = vld [vmem:[%s1116] sm:$0xff]
        %v1118 = vld [vmem:[%s1116 + $0x8] sm:$0xff]
        %v1119 = vld [vmem:[%s1116 + $0x18] sm:$0xff]
        %v1120 = vld [vmem:[%s1116 + $0x20] sm:$0xff]
        %v1121 = vld [vmem:[%s1116 + $0x30] sm:$0xff]
        %v1122 = vld [vmem:[%s1116 + $0x38] sm:$0xff]
        %v1123 = vld [vmem:[%s1116 + $0x48] sm:$0xff]
        %v1124 = vld [vmem:[%s1116 + $0x50] sm:$0xff]
        %v1125 = vld [vmem:[%s1116 + $0x60] sm:$0xff]
        %v1126 = vld [vmem:[%s1116 + $0x68] sm:$0xff]
        %v1127 = vld [vmem:[%s1116 + $0x78] sm:$0xff]
        %v1128 = vld [vmem:[%s1116 + $0x80] sm:$0xff]
        %v1129 = vld [vmem:[%s1116 + $0x90] sm:$0xff]
        %v1130 = vld [vmem:[%s1116 + $0x98] sm:$0xff]
        %v1131 = vld [vmem:[%s1116 + $0xa8] sm:$0xff]
        %v1132 = vld [vmem:[%s1116 + $0xb0] sm:$0xff]
        %v1133 = vpack.c.bf16 %v1118, %v1117
        %v1134 = vpack.c.bf16 %v1120, %v1119
        %v1135 = vpack.c.bf16 %v1122, %v1121
        %v1136 = vpack.c.bf16 %v1124, %v1123
        %v1137 = vpack.c.bf16 %v1126, %v1125
        %v1138 = vpack.c.bf16 %v1128, %v1127
        %v1139 = vpack.c.bf16 %v1130, %v1129
        %v1140 = vpack.c.bf16 %v1132, %v1131
        %s1141 = scalar_lea.vmem %s2, 6
        %v1142 = vld [vmem:[%s1141] sm:$0x3]
        %v1144 = vsel %vm528, %v1133, 0
        %v1147 = vsel %vm528, %v1134, 0
        %v1150 = vsel %vm528, %v1135, 0
        %v1153 = vsel %vm528, %v1136, 0
        %v1156 = vsel %vm528, %v1137, 0
        %v1159 = vsel %vm528, %v1138, 0
        %v1162 = vsel %vm528, %v1139, 0
        %v1165 = vsel %vm528, %v1140, 0
        %v1168 = vsel %vm553, %v1142, 0
        %1170 = vmatprep.subr.bf16.mxu0 0
        %1171 = vmatpush1.bf16.msra.mxu0 %v1168
        %1172 = vmatprep.subr.bf16.mxu0 0
        %1173 = vmatpush1.bf16.msra.mxu0 0
        %1174 = vmatprep.subr.bf16.mxu0 0
        %1175 = vmatpush1.bf16.msra.mxu0 0
        %1176 = vmatprep.subr.bf16.mxu0 0
        %1177 = vmatpush1.bf16.msra.mxu0 0
        %1178 = vmatprep.subr.bf16.mxu0 0
        %1179 = vmatpush1.bf16.msra.mxu0 0
        %1180 = vmatprep.subr.bf16.mxu0 0
        %1181 = vmatpush1.bf16.msra.mxu0 0
        %1182 = vmatprep.subr.bf16.mxu0 0
        %1183 = vmatpush1.bf16.msra.mxu0 0
        %1184 = vmatprep.subr.bf16.mxu0 0
        %1185 = vmatpush1.bf16.msra.mxu0 0
        %1186 = vmatprep.subr.bf16.mxu0 0
        %1187 = vmatpush1.bf16.msra.mxu0 0
        %1188 = vmatprep.subr.bf16.mxu0 0
        %1189 = vmatpush1.bf16.msra.mxu0 0
        %1190 = vmatprep.subr.bf16.mxu0 0
        %1191 = vmatpush1.bf16.msra.mxu0 0
        %1192 = vmatprep.subr.bf16.mxu0 0
        %1193 = vmatpush1.bf16.msra.mxu0 0
        %1194 = vmatprep.subr.bf16.mxu0 0
        %1195 = vmatpush1.bf16.msra.mxu0 0
        %1196 = vmatprep.subr.bf16.mxu0 0
        %1197 = vmatpush1.bf16.msra.mxu0 0
        %1198 = vmatprep.subr.bf16.mxu0 0
        %1199 = vmatpush1.bf16.msra.mxu0 0
        %1200 = vmatprep.subr.bf16.mxu0 0
        %1201 = vmatpush1.bf16.msra.mxu0 0
        %1202 = vmatprep.mubr.bf16.mxu0 0
        %1203 = vmatmul.mubr.bf16.gmra.mrb[0].mxu0 %v1144
        %v1204 = vpop.f32.mrb[0].mxu0
        %v1205 = vadd.f32 0.0, %v1204
        %v1206 = vpop.f32.mrb[0].mxu0
        %v1207 = vpop.f32.mrb[0].mxu0
        %v1208 = vadd.f32 0.0, %v1207
        %v1209 = vpop.f32.mrb[0].mxu0
        %1210 = vmatprep.mubr.bf16.mxu0 0
        %1211 = vmatmul.mubr.bf16.gmra.mrb[0].mxu0 %v1147
        %v1212 = vpop.f32.mrb[0].mxu0
        %v1213 = vadd.f32 0.0, %v1212
        %v1214 = vpop.f32.mrb[0].mxu0
        %v1215 = vpop.f32.mrb[0].mxu0
        %v1216 = vadd.f32 0.0, %v1215
        %v1217 = vpop.f32.mrb[0].mxu0
        %1218 = vmatprep.mubr.bf16.mxu0 0
        %1219 = vmatmul.mubr.bf16.gmra.mrb[0].mxu0 %v1150
        %v1220 = vpop.f32.mrb[0].mxu0
        %v1221 = vadd.f32 0.0, %v1220
        %v1222 = vpop.f32.mrb[0].mxu0
        %v1223 = vpop.f32.mrb[0].mxu0
        %v1224 = vadd.f32 0.0, %v1223
        %v1225 = vpop.f32.mrb[0].mxu0
        %1226 = vmatprep.mubr.bf16.mxu0 0
        %1227 = vmatmul.mubr.bf16.gmra.mrb[0].mxu0 %v1153
        %v1228 = vpop.f32.mrb[0].mxu0
        %v1229 = vadd.f32 0.0, %v1228
        %v1230 = vpop.f32.mrb[0].mxu0
        %v1231 = vpop.f32.mrb[0].mxu0
        %v1232 = vadd.f32 0.0, %v1231
        %v1233 = vpop.f32.mrb[0].mxu0
        %1234 = vmatprep.mubr.bf16.mxu0 0
        %1235 = vmatmul.mubr.bf16.gmra.mrb[0].mxu0 %v1156
        %v1236 = vpop.f32.mrb[0].mxu0
        %v1237 = vadd.f32 0.0, %v1236
        %v1238 = vpop.f32.mrb[0].mxu0
        %v1239 = vpop.f32.mrb[0].mxu0
        %v1240 = vadd.f32 0.0, %v1239
        %v1241 = vpop.f32.mrb[0].mxu0
        %1242 = vmatprep.mubr.bf16.mxu0 0
        %1243 = vmatmul.mubr.bf16.gmra.mrb[0].mxu0 %v1159
        %v1244 = vpop.f32.mrb[0].mxu0
        %v1245 = vadd.f32 0.0, %v1244
        %v1246 = vpop.f32.mrb[0].mxu0
        %v1247 = vpop.f32.mrb[0].mxu0
        %v1248 = vadd.f32 0.0, %v1247
        %v1249 = vpop.f32.mrb[0].mxu0
        %1250 = vmatprep.mubr.bf16.mxu0 0
        %1251 = vmatmul.mubr.bf16.gmra.mrb[0].mxu0 %v1162
        %v1252 = vpop.f32.mrb[0].mxu0
        %v1253 = vadd.f32 0.0, %v1252
        %v1254 = vpop.f32.mrb[0].mxu0
        %v1255 = vpop.f32.mrb[0].mxu0
        %v1256 = vadd.f32 0.0, %v1255
        %v1257 = vpop.f32.mrb[0].mxu0
        %1258 = vmatprep.mubr.bf16.mxu0 0
        %1259 = vmatmul.mubr.bf16.gmra.mrb[0].mxu0 %v1165
        %v1260 = vpop.f32.mrb[0].mxu0
        %v1261 = vadd.f32 0.0, %v1260
        %v1262 = vpop.f32.mrb[0].mxu0
        %v1263 = vpop.f32.mrb[0].mxu0
        %v1264 = vadd.f32 0.0, %v1263
        %v1265 = vpop.f32.mrb[0].mxu0
        %1266 = vdwg.mxu0
        %v1267 = vadd.f32 %v1098, %v1205
        %v1268 = vadd.f32 %v1099, %v1208
        %v1269 = vadd.f32 %v1100, %v1213
        %v1270 = vadd.f32 %v1101, %v1216
        %v1271 = vadd.f32 %v1102, %v1221
        %v1272 = vadd.f32 %v1103, %v1224
        %v1273 = vadd.f32 %v1104, %v1229
        %v1274 = vadd.f32 %v1105, %v1232
        %v1275 = vadd.f32 %v1106, %v1237
        %v1276 = vadd.f32 %v1107, %v1240
        %v1277 = vadd.f32 %v1108, %v1245
        %v1278 = vadd.f32 %v1109, %v1248
        %v1279 = vadd.f32 %v1110, %v1253
        %v1280 = vadd.f32 %v1111, %v1256
        %v1281 = vadd.f32 %v1112, %v1261
        %v1282 = vadd.f32 %v1113, %v1264
        %v1283 = vld [vmem:[%s1116 + $0x2] sm:$0xff]
        %v1284 = vld [vmem:[%s1116 + $0xa] sm:$0xff]
        %v1285 = vld [vmem:[%s1116 + $0x1a] sm:$0xff]
        %v1286 = vld [vmem:[%s1116 + $0x22] sm:$0xff]
        %v1287 = vld [vmem:[%s1116 + $0x32] sm:$0xff]
        %v1288 = vld [vmem:[%s1116 + $0x3a] sm:$0xff]
        %v1289 = vld [vmem:[%s1116 + $0x4a] sm:$0xff]
        %v1290 = vld [vmem:[%s1116 + $0x52] sm:$0xff]
        %v1291 = vld [vmem:[%s1116 + $0x62] sm:$0xff]
        %v1292 = vld [vmem:[%s1116 + $0x6a] sm:$0xff]
        %v1293 = vld [vmem:[%s1116 + $0x7a] sm:$0xff]
        %v1294 = vld [vmem:[%s1116 + $0x82] sm:$0xff]
        %v1295 = vld [vmem:[%s1116 + $0x92] sm:$0xff]
        %v1296 = vld [vmem:[%s1116 + $0x9a] sm:$0xff]
        %v1297 = vld [vmem:[%s1116 + $0xaa] sm:$0xff]
        %v1298 = vld [vmem:[%s1116 + $0xb2] sm:$0xff]
        %v1299 = vpack.c.bf16 %v1284, %v1283
        %v1300 = vpack.c.bf16 %v1286, %v1285
        %v1301 = vpack.c.bf16 %v1288, %v1287
        %v1302 = vpack.c.bf16 %v1290, %v1289
        %v1303 = vpack.c.bf16 %v1292, %v1291
        %v1304 = vpack.c.bf16 %v1294, %v1293
        %v1305 = vpack.c.bf16 %v1296, %v1295
        %v1306 = vpack.c.bf16 %v1298, %v1297
        %s1307 = scalar_lea.vmem %s2, 8
        %v1308 = vld [vmem:[%s1307] sm:$0x3]
        %v1310 = vsel %vm528, %v1299, 0
        %v1313 = vsel %vm528, %v1300, 0
        %v1316 = vsel %vm528, %v1301, 0
        %v1319 = vsel %vm528, %v1302, 0
        %v1322 = vsel %vm528, %v1303, 0
        %v1325 = vsel %vm528, %v1304, 0
        %v1328 = vsel %vm528, %v1305, 0
        %v1331 = vsel %vm528, %v1306, 0
        %v1334 = vsel %vm553, %v1308, 0
        %1336 = vmatprep.subr.bf16.mxu0 0
        %1337 = vmatpush1.bf16.msra.mxu0 %v1334
        %1338 = vmatprep.subr.bf16.mxu0 0
        %1339 = vmatpush1.bf16.msra.mxu0 0
        %1340 = vmatprep.subr.bf16.mxu0 0
        %1341 = vmatpush1.bf16.msra.mxu0 0
        %1342 = vmatprep.subr.bf16.mxu0 0
        %1343 = vmatpush1.bf16.msra.mxu0 0
        %1344 = vmatprep.subr.bf16.mxu0 0
        %1345 = vmatpush1.bf16.msra.mxu0 0
        %1346 = vmatprep.subr.bf16.mxu0 0
        %1347 = vmatpush1.bf16.msra.mxu0 0
        %1348 = vmatprep.subr.bf16.mxu0 0
        %1349 = vmatpush1.bf16.msra.mxu0 0
        %1350 = vmatprep.subr.bf16.mxu0 0
        %1351 = vmatpush1.bf16.msra.mxu0 0
        %1352 = vmatprep.subr.bf16.mxu0 0
        %1353 = vmatpush1.bf16.msra.mxu0 0
        %1354 = vmatprep.subr.bf16.mxu0 0
        %1355 = vmatpush1.bf16.msra.mxu0 0
        %1356 = vmatprep.subr.bf16.mxu0 0
        %1357 = vmatpush1.bf16.msra.mxu0 0
        %1358 = vmatprep.subr.bf16.mxu0 0
        %1359 = vmatpush1.bf16.msra.mxu0 0
        %1360 = vmatprep.subr.bf16.mxu0 0
        %1361 = vmatpush1.bf16.msra.mxu0 0
        %1362 = vmatprep.subr.bf16.mxu0 0
        %1363 = vmatpush1.bf16.msra.mxu0 0
        %1364 = vmatprep.subr.bf16.mxu0 0
        %1365 = vmatpush1.bf16.msra.mxu0 0
        %1366 = vmatprep.subr.bf16.mxu0 0
        %1367 = vmatpush1.bf16.msra.mxu0 0
        %1368 = vmatprep.mubr.bf16.mxu0 0
        %1369 = vmatmul.mubr.bf16.gmra.mrb[0].mxu0 %v1310
        %v1370 = vpop.f32.mrb[0].mxu0
        %v1371 = vadd.f32 0.0, %v1370
        %v1372 = vpop.f32.mrb[0].mxu0
        %v1373 = vpop.f32.mrb[0].mxu0
        %v1374 = vadd.f32 0.0, %v1373
        %v1375 = vpop.f32.mrb[0].mxu0
        %1376 = vmatprep.mubr.bf16.mxu0 0
        %1377 = vmatmul.mubr.bf16.gmra.mrb[0].mxu0 %v1313
        %v1378 = vpop.f32.mrb[0].mxu0
        %v1379 = vadd.f32 0.0, %v1378
        %v1380 = vpop.f32.mrb[0].mxu0
        %v1381 = vpop.f32.mrb[0].mxu0
        %v1382 = vadd.f32 0.0, %v1381
        %v1383 = vpop.f32.mrb[0].mxu0
        %1384 = vmatprep.mubr.bf16.mxu0 0
        %1385 = vmatmul.mubr.bf16.gmra.mrb[0].mxu0 %v1316
        %v1386 = vpop.f32.mrb[0].mxu0
        %v1387 = vadd.f32 0.0, %v1386
        %v1388 = vpop.f32.mrb[0].mxu0
        %v1389 = vpop.f32.mrb[0].mxu0
        %v1390 = vadd.f32 0.0, %v1389
        %v1391 = vpop.f32.mrb[0].mxu0
        %1392 = vmatprep.mubr.bf16.mxu0 0
        %1393 = vmatmul.mubr.bf16.gmra.mrb[0].mxu0 %v1319
        %v1394 = vpop.f32.mrb[0].mxu0
        %v1395 = vadd.f32 0.0, %v1394
        %v1396 = vpop.f32.mrb[0].mxu0
        %v1397 = vpop.f32.mrb[0].mxu0
        %v1398 = vadd.f32 0.0, %v1397
        %v1399 = vpop.f32.mrb[0].mxu0
        %1400 = vmatprep.mubr.bf16.mxu0 0
        %1401 = vmatmul.mubr.bf16.gmra.mrb[0].mxu0 %v1322
        %v1402 = vpop.f32.mrb[0].mxu0
        %v1403 = vadd.f32 0.0, %v1402
        %v1404 = vpop.f32.mrb[0].mxu0
        %v1405 = vpop.f32.mrb[0].mxu0
        %v1406 = vadd.f32 0.0, %v1405
        %v1407 = vpop.f32.mrb[0].mxu0
        %1408 = vmatprep.mubr.bf16.mxu0 0
        %1409 = vmatmul.mubr.bf16.gmra.mrb[0].mxu0 %v1325
        %v1410 = vpop.f32.mrb[0].mxu0
        %v1411 = vadd.f32 0.0, %v1410
        %v1412 = vpop.f32.mrb[0].mxu0
        %v1413 = vpop.f32.mrb[0].mxu0
        %v1414 = vadd.f32 0.0, %v1413
        %v1415 = vpop.f32.mrb[0].mxu0
        %1416 = vmatprep.mubr.bf16.mxu0 0
        %1417 = vmatmul.mubr.bf16.gmra.mrb[0].mxu0 %v1328
        %v1418 = vpop.f32.mrb[0].mxu0
        %v1419 = vadd.f32 0.0, %v1418
        %v1420 = vpop.f32.mrb[0].mxu0
        %v1421 = vpop.f32.mrb[0].mxu0
        %v1422 = vadd.f32 0.0, %v1421
        %v1423 = vpop.f32.mrb[0].mxu0
        %1424 = vmatprep.mubr.bf16.mxu0 0
        %1425 = vmatmul.mubr.bf16.gmra.mrb[0].mxu0 %v1331
        %v1426 = vpop.f32.mrb[0].mxu0
        %v1427 = vadd.f32 0.0, %v1426
        %v1428 = vpop.f32.mrb[0].mxu0
        %v1429 = vpop.f32.mrb[0].mxu0
        %v1430 = vadd.f32 0.0, %v1429
        %v1431 = vpop.f32.mrb[0].mxu0
        %1432 = vdwg.mxu0
        %v1433 = vadd.f32 %v1267, %v1371
        %v1434 = vadd.f32 %v1268, %v1374
        %v1435 = vadd.f32 %v1269, %v1379
        %v1436 = vadd.f32 %v1270, %v1382
        %v1437 = vadd.f32 %v1271, %v1387
        %v1438 = vadd.f32 %v1272, %v1390
        %v1439 = vadd.f32 %v1273, %v1395
        %v1440 = vadd.f32 %v1274, %v1398
        %v1441 = vadd.f32 %v1275, %v1403
        %v1442 = vadd.f32 %v1276, %v1406
        %v1443 = vadd.f32 %v1277, %v1411
        %v1444 = vadd.f32 %v1278, %v1414
        %v1445 = vadd.f32 %v1279, %v1419
        %v1446 = vadd.f32 %v1280, %v1422
        %v1447 = vadd.f32 %v1281, %v1427
        %v1448 = vadd.f32 %v1282, %v1430
        %s1449 = sadd.s32 %s500, 2
        %s1450 = smul.u32 %s1449, 24
        %s1451 = scalar_lea.vmem [#allocation2], %s1450
        %v1452 = vld [vmem:[%s1451] sm:$0xff]
        %v1453 = vld [vmem:[%s1451 + $0x8] sm:$0xff]
        %v1454 = vld [vmem:[%s1451 + $0x18] sm:$0xff]
        %v1455 = vld [vmem:[%s1451 + $0x20] sm:$0xff]
        %v1456 = vld [vmem:[%s1451 + $0x30] sm:$0xff]
        %v1457 = vld [vmem:[%s1451 + $0x38] sm:$0xff]
        %v1458 = vld [vmem:[%s1451 + $0x48] sm:$0xff]
        %v1459 = vld [vmem:[%s1451 + $0x50] sm:$0xff]
        %v1460 = vld [vmem:[%s1451 + $0x60] sm:$0xff]
        %v1461 = vld [vmem:[%s1451 + $0x68] sm:$0xff]
        %v1462 = vld [vmem:[%s1451 + $0x78] sm:$0xff]
        %v1463 = vld [vmem:[%s1451 + $0x80] sm:$0xff]
        %v1464 = vld [vmem:[%s1451 + $0x90] sm:$0xff]
        %v1465 = vld [vmem:[%s1451 + $0x98] sm:$0xff]
        %v1466 = vld [vmem:[%s1451 + $0xa8] sm:$0xff]
        %v1467 = vld [vmem:[%s1451 + $0xb0] sm:$0xff]
        %v1468 = vpack.c.bf16 %v1453, %v1452
        %v1469 = vpack.c.bf16 %v1455, %v1454
        %v1470 = vpack.c.bf16 %v1457, %v1456
        %v1471 = vpack.c.bf16 %v1459, %v1458
        %v1472 = vpack.c.bf16 %v1461, %v1460
        %v1473 = vpack.c.bf16 %v1463, %v1462
        %v1474 = vpack.c.bf16 %v1465, %v1464
        %v1475 = vpack.c.bf16 %v1467, %v1466
        %s1476 = scalar_lea.vmem %s2, 10
        %v1477 = vld [vmem:[%s1476] sm:$0x3]
        %v1479 = vsel %vm528, %v1468, 0
        %v1482 = vsel %vm528, %v1469, 0
        %v1485 = vsel %vm528, %v1470, 0
        %v1488 = vsel %vm528, %v1471, 0
        %v1491 = vsel %vm528, %v1472, 0
        %v1494 = vsel %vm528, %v1473, 0
        %v1497 = vsel %vm528, %v1474, 0
        %v1500 = vsel %vm528, %v1475, 0
        %v1503 = vsel %vm553, %v1477, 0
        %1505 = vmatprep.subr.bf16.mxu0 0
        %1506 = vmatpush1.bf16.msra.mxu0 %v1503
        %1507 = vmatprep.subr.bf16.mxu0 0
        %1508 = vmatpush1.bf16.msra.mxu0 0
        %1509 = vmatprep.subr.bf16.mxu0 0
        %1510 = vmatpush1.bf16.msra.mxu0 0
        %1511 = vmatprep.subr.bf16.mxu0 0
        %1512 = vmatpush1.bf16.msra.mxu0 0
        %1513 = vmatprep.subr.bf16.mxu0 0
        %1514 = vmatpush1.bf16.msra.mxu0 0
        %1515 = vmatprep.subr.bf16.mxu0 0
        %1516 = vmatpush1.bf16.msra.mxu0 0
        %1517 = vmatprep.subr.bf16.mxu0 0
        %1518 = vmatpush1.bf16.msra.mxu0 0
        %1519 = vmatprep.subr.bf16.mxu0 0
        %1520 = vmatpush1.bf16.msra.mxu0 0
        %1521 = vmatprep.subr.bf16.mxu0 0
        %1522 = vmatpush1.bf16.msra.mxu0 0
        %1523 = vmatprep.subr.bf16.mxu0 0
        %1524 = vmatpush1.bf16.msra.mxu0 0
        %1525 = vmatprep.subr.bf16.mxu0 0
        %1526 = vmatpush1.bf16.msra.mxu0 0
        %1527 = vmatprep.subr.bf16.mxu0 0
        %1528 = vmatpush1.bf16.msra.mxu0 0
        %1529 = vmatprep.subr.bf16.mxu0 0
        %1530 = vmatpush1.bf16.msra.mxu0 0
        %1531 = vmatprep.subr.bf16.mxu0 0
        %1532 = vmatpush1.bf16.msra.mxu0 0
        %1533 = vmatprep.subr.bf16.mxu0 0
        %1534 = vmatpush1.bf16.msra.mxu0 0
        %1535 = vmatprep.subr.bf16.mxu0 0
        %1536 = vmatpush1.bf16.msra.mxu0 0
        %1537 = vmatprep.mubr.bf16.mxu0 0
        %1538 = vmatmul.mubr.bf16.gmra.mrb[0].mxu0 %v1479
        %v1539 = vpop.f32.mrb[0].mxu0
        %v1540 = vadd.f32 0.0, %v1539
        %v1541 = vpop.f32.mrb[0].mxu0
        %v1542 = vpop.f32.mrb[0].mxu0
        %v1543 = vadd.f32 0.0, %v1542
        %v1544 = vpop.f32.mrb[0].mxu0
        %1545 = vmatprep.mubr.bf16.mxu0 0
        %1546 = vmatmul.mubr.bf16.gmra.mrb[0].mxu0 %v1482
        %v1547 = vpop.f32.mrb[0].mxu0
        %v1548 = vadd.f32 0.0, %v1547
        %v1549 = vpop.f32.mrb[0].mxu0
        %v1550 = vpop.f32.mrb[0].mxu0
        %v1551 = vadd.f32 0.0, %v1550
        %v1552 = vpop.f32.mrb[0].mxu0
        %1553 = vmatprep.mubr.bf16.mxu0 0
        %1554 = vmatmul.mubr.bf16.gmra.mrb[0].mxu0 %v1485
        %v1555 = vpop.f32.mrb[0].mxu0
        %v1556 = vadd.f32 0.0, %v1555
        %v1557 = vpop.f32.mrb[0].mxu0
        %v1558 = vpop.f32.mrb[0].mxu0
        %v1559 = vadd.f32 0.0, %v1558
        %v1560 = vpop.f32.mrb[0].mxu0
        %1561 = vmatprep.mubr.bf16.mxu0 0
        %1562 = vmatmul.mubr.bf16.gmra.mrb[0].mxu0 %v1488
        %v1563 = vpop.f32.mrb[0].mxu0
        %v1564 = vadd.f32 0.0, %v1563
        %v1565 = vpop.f32.mrb[0].mxu0
        %v1566 = vpop.f32.mrb[0].mxu0
        %v1567 = vadd.f32 0.0, %v1566
        %v1568 = vpop.f32.mrb[0].mxu0
        %1569 = vmatprep.mubr.bf16.mxu0 0
        %1570 = vmatmul.mubr.bf16.gmra.mrb[0].mxu0 %v1491
        %v1571 = vpop.f32.mrb[0].mxu0
        %v1572 = vadd.f32 0.0, %v1571
        %v1573 = vpop.f32.mrb[0].mxu0
        %v1574 = vpop.f32.mrb[0].mxu0
        %v1575 = vadd.f32 0.0, %v1574
        %v1576 = vpop.f32.mrb[0].mxu0
        %1577 = vmatprep.mubr.bf16.mxu0 0
        %1578 = vmatmul.mubr.bf16.gmra.mrb[0].mxu0 %v1494
        %v1579 = vpop.f32.mrb[0].mxu0
        %v1580 = vadd.f32 0.0, %v1579
        %v1581 = vpop.f32.mrb[0].mxu0
        %v1582 = vpop.f32.mrb[0].mxu0
        %v1583 = vadd.f32 0.0, %v1582
        %v1584 = vpop.f32.mrb[0].mxu0
        %1585 = vmatprep.mubr.bf16.mxu0 0
        %1586 = vmatmul.mubr.bf16.gmra.mrb[0].mxu0 %v1497
        %v1587 = vpop.f32.mrb[0].mxu0
        %v1588 = vadd.f32 0.0, %v1587
        %v1589 = vpop.f32.mrb[0].mxu0
        %v1590 = vpop.f32.mrb[0].mxu0
        %v1591 = vadd.f32 0.0, %v1590
        %v1592 = vpop.f32.mrb[0].mxu0
        %1593 = vmatprep.mubr.bf16.mxu0 0
        %1594 = vmatmul.mubr.bf16.gmra.mrb[0].mxu0 %v1500
        %v1595 = vpop.f32.mrb[0].mxu0
        %v1596 = vadd.f32 0.0, %v1595
        %v1597 = vpop.f32.mrb[0].mxu0
        %v1598 = vpop.f32.mrb[0].mxu0
        %v1599 = vadd.f32 0.0, %v1598
        %v1600 = vpop.f32.mrb[0].mxu0
        %1601 = vdwg.mxu0
        %v1602 = vadd.f32 %v1433, %v1540
        %v1603 = vadd.f32 %v1434, %v1543
        %v1604 = vadd.f32 %v1435, %v1548
        %v1605 = vadd.f32 %v1436, %v1551
        %v1606 = vadd.f32 %v1437, %v1556
        %v1607 = vadd.f32 %v1438, %v1559
        %v1608 = vadd.f32 %v1439, %v1564
        %v1609 = vadd.f32 %v1440, %v1567
        %v1610 = vadd.f32 %v1441, %v1572
        %v1611 = vadd.f32 %v1442, %v1575
        %v1612 = vadd.f32 %v1443, %v1580
        %v1613 = vadd.f32 %v1444, %v1583
        %v1614 = vadd.f32 %v1445, %v1588
        %v1615 = vadd.f32 %v1446, %v1591
        %v1616 = vadd.f32 %v1447, %v1596
        %v1617 = vadd.f32 %v1448, %v1599
        %v1618 = vld [vmem:[%s1451 + $0x1] sm:$0xff]
        %v1619 = vld [vmem:[%s1451 + $0x9] sm:$0xff]
        %v1620 = vld [vmem:[%s1451 + $0x19] sm:$0xff]
        %v1621 = vld [vmem:[%s1451 + $0x21] sm:$0xff]
        %v1622 = vld [vmem:[%s1451 + $0x31] sm:$0xff]
        %v1623 = vld [vmem:[%s1451 + $0x39] sm:$0xff]
        %v1624 = vld [vmem:[%s1451 + $0x49] sm:$0xff]
        %v1625 = vld [vmem:[%s1451 + $0x51] sm:$0xff]
        %v1626 = vld [vmem:[%s1451 + $0x61] sm:$0xff]
        %v1627 = vld [vmem:[%s1451 + $0x69] sm:$0xff]
        %v1628 = vld [vmem:[%s1451 + $0x79] sm:$0xff]
        %v1629 = vld [vmem:[%s1451 + $0x81] sm:$0xff]
        %v1630 = vld [vmem:[%s1451 + $0x91] sm:$0xff]
        %v1631 = vld [vmem:[%s1451 + $0x99] sm:$0xff]
        %v1632 = vld [vmem:[%s1451 + $0xa9] sm:$0xff]
        %v1633 = vld [vmem:[%s1451 + $0xb1] sm:$0xff]
        %v1634 = vpack.c.bf16 %v1619, %v1618
        %v1635 = vpack.c.bf16 %v1621, %v1620
        %v1636 = vpack.c.bf16 %v1623, %v1622
        %v1637 = vpack.c.bf16 %v1625, %v1624
        %v1638 = vpack.c.bf16 %v1627, %v1626
        %v1639 = vpack.c.bf16 %v1629, %v1628
        %v1640 = vpack.c.bf16 %v1631, %v1630
        %v1641 = vpack.c.bf16 %v1633, %v1632
        %s1642 = scalar_lea.vmem %s2, 12
        %v1643 = vld [vmem:[%s1642] sm:$0x3]
        %v1645 = vsel %vm528, %v1634, 0
        %v1648 = vsel %vm528, %v1635, 0
        %v1651 = vsel %vm528, %v1636, 0
        %v1654 = vsel %vm528, %v1637, 0
        %v1657 = vsel %vm528, %v1638, 0
        %v1660 = vsel %vm528, %v1639, 0
        %v1663 = vsel %vm528, %v1640, 0
        %v1666 = vsel %vm528, %v1641, 0
        %v1669 = vsel %vm553, %v1643, 0
        %1671 = vmatprep.subr.bf16.mxu0 0
        %1672 = vmatpush1.bf16.msra.mxu0 %v1669
        %1673 = vmatprep.subr.bf16.mxu0 0
        %1674 = vmatpush1.bf16.msra.mxu0 0
        %1675 = vmatprep.subr.bf16.mxu0 0
        %1676 = vmatpush1.bf16.msra.mxu0 0
        %1677 = vmatprep.subr.bf16.mxu0 0
        %1678 = vmatpush1.bf16.msra.mxu0 0
        %1679 = vmatprep.subr.bf16.mxu0 0
        %1680 = vmatpush1.bf16.msra.mxu0 0
        %1681 = vmatprep.subr.bf16.mxu0 0
        %1682 = vmatpush1.bf16.msra.mxu0 0
        %1683 = vmatprep.subr.bf16.mxu0 0
        %1684 = vmatpush1.bf16.msra.mxu0 0
        %1685 = vmatprep.subr.bf16.mxu0 0
        %1686 = vmatpush1.bf16.msra.mxu0 0
        %1687 = vmatprep.subr.bf16.mxu0 0
        %1688 = vmatpush1.bf16.msra.mxu0 0
        %1689 = vmatprep.subr.bf16.mxu0 0
        %1690 = vmatpush1.bf16.msra.mxu0 0
        %1691 = vmatprep.subr.bf16.mxu0 0
        %1692 = vmatpush1.bf16.msra.mxu0 0
        %1693 = vmatprep.subr.bf16.mxu0 0
        %1694 = vmatpush1.bf16.msra.mxu0 0
        %1695 = vmatprep.subr.bf16.mxu0 0
        %1696 = vmatpush1.bf16.msra.mxu0 0
        %1697 = vmatprep.subr.bf16.mxu0 0
        %1698 = vmatpush1.bf16.msra.mxu0 0
        %1699 = vmatprep.subr.bf16.mxu0 0
        %1700 = vmatpush1.bf16.msra.mxu0 0
        %1701 = vmatprep.subr.bf16.mxu0 0
        %1702 = vmatpush1.bf16.msra.mxu0 0
        %1703 = vmatprep.mubr.bf16.mxu0 0
        %1704 = vmatmul.mubr.bf16.gmra.mrb[0].mxu0 %v1645
        %v1705 = vpop.f32.mrb[0].mxu0
        %v1706 = vadd.f32 0.0, %v1705
        %v1707 = vpop.f32.mrb[0].mxu0
        %v1708 = vpop.f32.mrb[0].mxu0
        %v1709 = vadd.f32 0.0, %v1708
        %v1710 = vpop.f32.mrb[0].mxu0
        %1711 = vmatprep.mubr.bf16.mxu0 0
        %1712 = vmatmul.mubr.bf16.gmra.mrb[0].mxu0 %v1648
        %v1713 = vpop.f32.mrb[0].mxu0
        %v1714 = vadd.f32 0.0, %v1713
        %v1715 = vpop.f32.mrb[0].mxu0
        %v1716 = vpop.f32.mrb[0].mxu0
        %v1717 = vadd.f32 0.0, %v1716
        %v1718 = vpop.f32.mrb[0].mxu0
        %1719 = vmatprep.mubr.bf16.mxu0 0
        %1720 = vmatmul.mubr.bf16.gmra.mrb[0].mxu0 %v1651
        %v1721 = vpop.f32.mrb[0].mxu0
        %v1722 = vadd.f32 0.0, %v1721
        %v1723 = vpop.f32.mrb[0].mxu0
        %v1724 = vpop.f32.mrb[0].mxu0
        %v1725 = vadd.f32 0.0, %v1724
        %v1726 = vpop.f32.mrb[0].mxu0
        %1727 = vmatprep.mubr.bf16.mxu0 0
        %1728 = vmatmul.mubr.bf16.gmra.mrb[0].mxu0 %v1654
        %v1729 = vpop.f32.mrb[0].mxu0
        %v1730 = vadd.f32 0.0, %v1729
        %v1731 = vpop.f32.mrb[0].mxu0
        %v1732 = vpop.f32.mrb[0].mxu0
        %v1733 = vadd.f32 0.0, %v1732
        %v1734 = vpop.f32.mrb[0].mxu0
        %1735 = vmatprep.mubr.bf16.mxu0 0
        %1736 = vmatmul.mubr.bf16.gmra.mrb[0].mxu0 %v1657
        %v1737 = vpop.f32.mrb[0].mxu0
        %v1738 = vadd.f32 0.0, %v1737
        %v1739 = vpop.f32.mrb[0].mxu0
        %v1740 = vpop.f32.mrb[0].mxu0
        %v1741 = vadd.f32 0.0, %v1740
        %v1742 = vpop.f32.mrb[0].mxu0
        %1743 = vmatprep.mubr.bf16.mxu0 0
        %1744 = vmatmul.mubr.bf16.gmra.mrb[0].mxu0 %v1660
        %v1745 = vpop.f32.mrb[0].mxu0
        %v1746 = vadd.f32 0.0, %v1745
        %v1747 = vpop.f32.mrb[0].mxu0
        %v1748 = vpop.f32.mrb[0].mxu0
        %v1749 = vadd.f32 0.0, %v1748
        %v1750 = vpop.f32.mrb[0].mxu0
        %1751 = vmatprep.mubr.bf16.mxu0 0
        %1752 = vmatmul.mubr.bf16.gmra.mrb[0].mxu0 %v1663
        %v1753 = vpop.f32.mrb[0].mxu0
        %v1754 = vadd.f32 0.0, %v1753
        %v1755 = vpop.f32.mrb[0].mxu0
        %v1756 = vpop.f32.mrb[0].mxu0
        %v1757 = vadd.f32 0.0, %v1756
        %v1758 = vpop.f32.mrb[0].mxu0
        %1759 = vmatprep.mubr.bf16.mxu0 0
        %1760 = vmatmul.mubr.bf16.gmra.mrb[0].mxu0 %v1666
        %v1761 = vpop.f32.mrb[0].mxu0
        %v1762 = vadd.f32 0.0, %v1761
        %v1763 = vpop.f32.mrb[0].mxu0
        %v1764 = vpop.f32.mrb[0].mxu0
        %v1765 = vadd.f32 0.0, %v1764
        %v1766 = vpop.f32.mrb[0].mxu0
        %1767 = vdwg.mxu0
        %v1768 = vadd.f32 %v1602, %v1706
        %v1769 = vadd.f32 %v1603, %v1709
        %v1770 = vadd.f32 %v1604, %v1714
        %v1771 = vadd.f32 %v1605, %v1717
        %v1772 = vadd.f32 %v1606, %v1722
        %v1773 = vadd.f32 %v1607, %v1725
        %v1774 = vadd.f32 %v1608, %v1730
        %v1775 = vadd.f32 %v1609, %v1733
        %v1776 = vadd.f32 %v1610, %v1738
        %v1777 = vadd.f32 %v1611, %v1741
        %v1778 = vadd.f32 %v1612, %v1746
        %v1779 = vadd.f32 %v1613, %v1749
        %v1780 = vadd.f32 %v1614, %v1754
        %v1781 = vadd.f32 %v1615, %v1757
        %v1782 = vadd.f32 %v1616, %v1762
        %v1783 = vadd.f32 %v1617, %v1765
        %v1784 = vld [vmem:[%s1451 + $0x2] sm:$0xff]
        %v1785 = vld [vmem:[%s1451 + $0xa] sm:$0xff]
        %v1786 = vld [vmem:[%s1451 + $0x1a] sm:$0xff]
        %v1787 = vld [vmem:[%s1451 + $0x22] sm:$0xff]
        %v1788 = vld [vmem:[%s1451 + $0x32] sm:$0xff]
        %v1789 = vld [vmem:[%s1451 + $0x3a] sm:$0xff]
        %v1790 = vld [vmem:[%s1451 + $0x4a] sm:$0xff]
        %v1791 = vld [vmem:[%s1451 + $0x52] sm:$0xff]
        %v1792 = vld [vmem:[%s1451 + $0x62] sm:$0xff]
        %v1793 = vld [vmem:[%s1451 + $0x6a] sm:$0xff]
        %v1794 = vld [vmem:[%s1451 + $0x7a] sm:$0xff]
        %v1795 = vld [vmem:[%s1451 + $0x82] sm:$0xff]
        %v1796 = vld [vmem:[%s1451 + $0x92] sm:$0xff]
        %v1797 = vld [vmem:[%s1451 + $0x9a] sm:$0xff]
        %v1798 = vld [vmem:[%s1451 + $0xaa] sm:$0xff]
        %v1799 = vld [vmem:[%s1451 + $0xb2] sm:$0xff]
        %v1800 = vpack.c.bf16 %v1785, %v1784
        %v1801 = vpack.c.bf16 %v1787, %v1786
        %v1802 = vpack.c.bf16 %v1789, %v1788
        %v1803 = vpack.c.bf16 %v1791, %v1790
        %v1804 = vpack.c.bf16 %v1793, %v1792
        %v1805 = vpack.c.bf16 %v1795, %v1794
        %v1806 = vpack.c.bf16 %v1797, %v1796
        %v1807 = vpack.c.bf16 %v1799, %v1798
        %s1808 = scalar_lea.vmem %s2, 14
        %v1809 = vld [vmem:[%s1808] sm:$0x3]
        %v1811 = vsel %vm528, %v1800, 0
        %v1814 = vsel %vm528, %v1801, 0
        %v1817 = vsel %vm528, %v1802, 0
        %v1820 = vsel %vm528, %v1803, 0
        %v1823 = vsel %vm528, %v1804, 0
        %v1826 = vsel %vm528, %v1805, 0
        %v1829 = vsel %vm528, %v1806, 0
        %v1832 = vsel %vm528, %v1807, 0
        %v1835 = vsel %vm553, %v1809, 0
        %1837 = vmatprep.subr.bf16.mxu0 0
        %1838 = vmatpush1.bf16.msra.mxu0 %v1835
        %1839 = vmatprep.subr.bf16.mxu0 0
        %1840 = vmatpush1.bf16.msra.mxu0 0
        %1841 = vmatprep.subr.bf16.mxu0 0
        %1842 = vmatpush1.bf16.msra.mxu0 0
        %1843 = vmatprep.subr.bf16.mxu0 0
        %1844 = vmatpush1.bf16.msra.mxu0 0
        %1845 = vmatprep.subr.bf16.mxu0 0
        %1846 = vmatpush1.bf16.msra.mxu0 0
        %1847 = vmatprep.subr.bf16.mxu0 0
        %1848 = vmatpush1.bf16.msra.mxu0 0
        %1849 = vmatprep.subr.bf16.mxu0 0
        %1850 = vmatpush1.bf16.msra.mxu0 0
        %1851 = vmatprep.subr.bf16.mxu0 0
        %1852 = vmatpush1.bf16.msra.mxu0 0
        %1853 = vmatprep.subr.bf16.mxu0 0
        %1854 = vmatpush1.bf16.msra.mxu0 0
        %1855 = vmatprep.subr.bf16.mxu0 0
        %1856 = vmatpush1.bf16.msra.mxu0 0
        %1857 = vmatprep.subr.bf16.mxu0 0
        %1858 = vmatpush1.bf16.msra.mxu0 0
        %1859 = vmatprep.subr.bf16.mxu0 0
        %1860 = vmatpush1.bf16.msra.mxu0 0
        %1861 = vmatprep.subr.bf16.mxu0 0
        %1862 = vmatpush1.bf16.msra.mxu0 0
        %1863 = vmatprep.subr.bf16.mxu0 0
        %1864 = vmatpush1.bf16.msra.mxu0 0
        %1865 = vmatprep.subr.bf16.mxu0 0
        %1866 = vmatpush1.bf16.msra.mxu0 0
        %1867 = vmatprep.subr.bf16.mxu0 0
        %1868 = vmatpush1.bf16.msra.mxu0 0
        %1869 = vmatprep.mubr.bf16.mxu0 0
        %1870 = vmatmul.mubr.bf16.gmra.mrb[0].mxu0 %v1811
        %v1871 = vpop.f32.mrb[0].mxu0
        %v1872 = vadd.f32 0.0, %v1871
        %v1873 = vpop.f32.mrb[0].mxu0
        %v1874 = vpop.f32.mrb[0].mxu0
        %v1875 = vadd.f32 0.0, %v1874
        %v1876 = vpop.f32.mrb[0].mxu0
        %1877 = vmatprep.mubr.bf16.mxu0 0
        %1878 = vmatmul.mubr.bf16.gmra.mrb[0].mxu0 %v1814
        %v1879 = vpop.f32.mrb[0].mxu0
        %v1880 = vadd.f32 0.0, %v1879
        %v1881 = vpop.f32.mrb[0].mxu0
        %v1882 = vpop.f32.mrb[0].mxu0
        %v1883 = vadd.f32 0.0, %v1882
        %v1884 = vpop.f32.mrb[0].mxu0
        %1885 = vmatprep.mubr.bf16.mxu0 0
        %1886 = vmatmul.mubr.bf16.gmra.mrb[0].mxu0 %v1817
        %v1887 = vpop.f32.mrb[0].mxu0
        %v1888 = vadd.f32 0.0, %v1887
        %v1889 = vpop.f32.mrb[0].mxu0
        %v1890 = vpop.f32.mrb[0].mxu0
        %v1891 = vadd.f32 0.0, %v1890
        %v1892 = vpop.f32.mrb[0].mxu0
        %1893 = vmatprep.mubr.bf16.mxu0 0
        %1894 = vmatmul.mubr.bf16.gmra.mrb[0].mxu0 %v1820
        %v1895 = vpop.f32.mrb[0].mxu0
        %v1896 = vadd.f32 0.0, %v1895
        %v1897 = vpop.f32.mrb[0].mxu0
        %v1898 = vpop.f32.mrb[0].mxu0
        %v1899 = vadd.f32 0.0, %v1898
        %v1900 = vpop.f32.mrb[0].mxu0
        %1901 = vmatprep.mubr.bf16.mxu0 0
        %1902 = vmatmul.mubr.bf16.gmra.mrb[0].mxu0 %v1823
        %v1903 = vpop.f32.mrb[0].mxu0
        %v1904 = vadd.f32 0.0, %v1903
        %v1905 = vpop.f32.mrb[0].mxu0
        %v1906 = vpop.f32.mrb[0].mxu0
        %v1907 = vadd.f32 0.0, %v1906
        %v1908 = vpop.f32.mrb[0].mxu0
        %1909 = vmatprep.mubr.bf16.mxu0 0
        %1910 = vmatmul.mubr.bf16.gmra.mrb[0].mxu0 %v1826
        %v1911 = vpop.f32.mrb[0].mxu0
        %v1912 = vadd.f32 0.0, %v1911
        %v1913 = vpop.f32.mrb[0].mxu0
        %v1914 = vpop.f32.mrb[0].mxu0
        %v1915 = vadd.f32 0.0, %v1914
        %v1916 = vpop.f32.mrb[0].mxu0
        %1917 = vmatprep.mubr.bf16.mxu0 0
        %1918 = vmatmul.mubr.bf16.gmra.mrb[0].mxu0 %v1829
        %v1919 = vpop.f32.mrb[0].mxu0
        %v1920 = vadd.f32 0.0, %v1919
        %v1921 = vpop.f32.mrb[0].mxu0
        %v1922 = vpop.f32.mrb[0].mxu0
        %v1923 = vadd.f32 0.0, %v1922
        %v1924 = vpop.f32.mrb[0].mxu0
        %1925 = vmatprep.mubr.bf16.mxu0 0
        %1926 = vmatmul.mubr.bf16.gmra.mrb[0].mxu0 %v1832
        %v1927 = vpop.f32.mrb[0].mxu0
        %v1928 = vadd.f32 0.0, %v1927
        %v1929 = vpop.f32.mrb[0].mxu0
        %v1930 = vpop.f32.mrb[0].mxu0
        %v1931 = vadd.f32 0.0, %v1930
        %v1932 = vpop.f32.mrb[0].mxu0
        %1933 = vdwg.mxu0
        %v1934 = vadd.f32 %v1768, %v1872
        %v1935 = vadd.f32 %v1769, %v1875
        %v1936 = vadd.f32 %v1770, %v1880
        %v1937 = vadd.f32 %v1771, %v1883
        %v1938 = vadd.f32 %v1772, %v1888
        %v1939 = vadd.f32 %v1773, %v1891
        %v1940 = vadd.f32 %v1774, %v1896
        %v1941 = vadd.f32 %v1775, %v1899
        %v1942 = vadd.f32 %v1776, %v1904
        %v1943 = vadd.f32 %v1777, %v1907
        %v1944 = vadd.f32 %v1778, %v1912
        %v1945 = vadd.f32 %v1779, %v1915
        %v1946 = vadd.f32 %v1780, %v1920
        %v1947 = vadd.f32 %v1781, %v1923
        %v1948 = vadd.f32 %v1782, %v1928
        %v1949 = vadd.f32 %v1783, %v1931
        %v1950 = vld [vmem:[%s4] sm:$0x1]
        %v1952 = vlaneseq
        %v1953 = vshrl.u32 %v1952, 7
        %v1954 = vsub.s32 0, %v1953
        %v1955 = vrot.slane %v1950, %v1954
        %v1957 = vmul.f32 %v1934, %v1955
        %v1958 = vmul.f32 %v1935, %v1955
        %v1959 = vmul.f32 %v1936, %v1955
        %v1960 = vmul.f32 %v1937, %v1955
        %v1961 = vmul.f32 %v1938, %v1955
        %v1962 = vmul.f32 %v1939, %v1955
        %v1963 = vmul.f32 %v1940, %v1955
        %v1964 = vmul.f32 %v1941, %v1955
        %v1965 = vmul.f32 %v1942, %v1955
        %v1966 = vmul.f32 %v1943, %v1955
        %v1967 = vmul.f32 %v1944, %v1955
        %v1968 = vmul.f32 %v1945, %v1955
        %v1969 = vmul.f32 %v1946, %v1955
        %v1970 = vmul.f32 %v1947, %v1955
        %v1971 = vmul.f32 %v1948, %v1955
        %v1972 = vmul.f32 %v1949, %v1955
        %v1973 = vld [vmem:[%s5] sm:$0x1]
        %v1975 = vlaneseq
        %v1976 = vshrl.u32 %v1975, 7
        %v1977 = vsub.s32 0, %v1976
        %v1978 = vrot.slane %v1973, %v1977
        %v1980 = vadd.f32 %v1957, %v1978
        %v1981 = vadd.f32 %v1958, %v1978
        %v1982 = vadd.f32 %v1959, %v1978
        %v1983 = vadd.f32 %v1960, %v1978
        %v1984 = vadd.f32 %v1961, %v1978
        %v1985 = vadd.f32 %v1962, %v1978
        %v1986 = vadd.f32 %v1963, %v1978
        %v1987 = vadd.f32 %v1964, %v1978
        %v1988 = vadd.f32 %v1965, %v1978
        %v1989 = vadd.f32 %v1966, %v1978
        %v1990 = vadd.f32 %v1967, %v1978
        %v1991 = vadd.f32 %v1968, %v1978
        %v1992 = vadd.f32 %v1969, %v1978
        %v1993 = vadd.f32 %v1970, %v1978
        %v1994 = vadd.f32 %v1971, %v1978
        %v1995 = vadd.f32 %v1972, %v1978
        %v1996 = vxor.u32 %v1980, 2147483648
        %v1997 = vxor.u32 %v1981, 2147483648
        %v1998 = vxor.u32 %v1982, 2147483648
        %v1999 = vxor.u32 %v1983, 2147483648
        %v2000 = vxor.u32 %v1984, 2147483648
        %v2001 = vxor.u32 %v1985, 2147483648
        %v2002 = vxor.u32 %v1986, 2147483648
        %v2003 = vxor.u32 %v1987, 2147483648
        %v2004 = vxor.u32 %v1988, 2147483648
        %v2005 = vxor.u32 %v1989, 2147483648
        %v2006 = vxor.u32 %v1990, 2147483648
        %v2007 = vxor.u32 %v1991, 2147483648
        %v2008 = vxor.u32 %v1992, 2147483648
        %v2009 = vxor.u32 %v1993, 2147483648
        %v2010 = vxor.u32 %v1994, 2147483648
        %v2011 = vxor.u32 %v1995, 2147483648
        %v2012 = vmul.f32 %v1996, 1.442695
        %v2013 = vpow.pop %v2012
        %v2014 = vmul.f32 %v1997, 1.442695
        %v2015 = vpow.pop %v2014
        %v2016 = vmul.f32 %v1998, 1.442695
        %v2017 = vpow.pop %v2016
        %v2018 = vmul.f32 %v1999, 1.442695
        %v2019 = vpow.pop %v2018
        %v2020 = vmul.f32 %v2000, 1.442695
        %v2021 = vpow.pop %v2020
        %v2022 = vmul.f32 %v2001, 1.442695
        %v2023 = vpow.pop %v2022
        %v2024 = vmul.f32 %v2002, 1.442695
        %v2025 = vpow.pop %v2024
        %v2026 = vmul.f32 %v2003, 1.442695
        %v2027 = vpow.pop %v2026
        %v2028 = vmul.f32 %v2004, 1.442695
        %v2029 = vpow.pop %v2028
        %v2030 = vmul.f32 %v2005, 1.442695
        %v2031 = vpow.pop %v2030
        %v2032 = vmul.f32 %v2006, 1.442695
        %v2033 = vpow.pop %v2032
        %v2034 = vmul.f32 %v2007, 1.442695
        %v2035 = vpow.pop %v2034
        %v2036 = vmul.f32 %v2008, 1.442695
        %v2037 = vpow.pop %v2036
        %v2038 = vmul.f32 %v2009, 1.442695
        %v2039 = vpow.pop %v2038
        %v2040 = vmul.f32 %v2010, 1.442695
        %v2041 = vpow.pop %v2040
        %v2042 = vmul.f32 %v2011, 1.442695
        %v2043 = vpow.pop %v2042
        %v2044 = vadd.f32 %v2013, 1.0
        %v2045 = vadd.f32 %v2015, 1.0
        %v2046 = vadd.f32 %v2017, 1.0
        %v2047 = vadd.f32 %v2019, 1.0
        %v2048 = vadd.f32 %v2021, 1.0
        %v2049 = vadd.f32 %v2023, 1.0
        %v2050 = vadd.f32 %v2025, 1.0
        %v2051 = vadd.f32 %v2027, 1.0
        %v2052 = vadd.f32 %v2029, 1.0
        %v2053 = vadd.f32 %v2031, 1.0
        %v2054 = vadd.f32 %v2033, 1.0
        %v2055 = vadd.f32 %v2035, 1.0
        %v2056 = vadd.f32 %v2037, 1.0
        %v2057 = vadd.f32 %v2039, 1.0
        %v2058 = vadd.f32 %v2041, 1.0
        %v2059 = vadd.f32 %v2043, 1.0
        %v2060 = vrcp.pop %v2044
        %v2061 = vmul.f32 1.0, %v2060
        %v2062 = vrcp.pop %v2045
        %v2063 = vmul.f32 1.0, %v2062
        %v2064 = vrcp.pop %v2046
        %v2065 = vmul.f32 1.0, %v2064
        %v2066 = vrcp.pop %v2047
        %v2067 = vmul.f32 1.0, %v2066
        %v2068 = vrcp.pop %v2048
        %v2069 = vmul.f32 1.0, %v2068
        %v2070 = vrcp.pop %v2049
        %v2071 = vmul.f32 1.0, %v2070
        %v2072 = vrcp.pop %v2050
        %v2073 = vmul.f32 1.0, %v2072
        %v2074 = vrcp.pop %v2051
        %v2075 = vmul.f32 1.0, %v2074
        %v2076 = vrcp.pop %v2052
        %v2077 = vmul.f32 1.0, %v2076
        %v2078 = vrcp.pop %v2053
        %v2079 = vmul.f32 1.0, %v2078
        %v2080 = vrcp.pop %v2054
        %v2081 = vmul.f32 1.0, %v2080
        %v2082 = vrcp.pop %v2055
        %v2083 = vmul.f32 1.0, %v2082
        %v2084 = vrcp.pop %v2056
        %v2085 = vmul.f32 1.0, %v2084
        %v2086 = vrcp.pop %v2057
        %v2087 = vmul.f32 1.0, %v2086
        %v2088 = vrcp.pop %v2058
        %v2089 = vmul.f32 1.0, %v2088
        %v2090 = vrcp.pop %v2059
        %v2091 = vmul.f32 1.0, %v2090
        %v2092 = vmul.f32 %v1980, %v2061
        %v2093 = vmul.f32 %v1981, %v2063
        %v2094 = vmul.f32 %v1982, %v2065
        %v2095 = vmul.f32 %v1983, %v2067
        %v2096 = vmul.f32 %v1984, %v2069
        %v2097 = vmul.f32 %v1985, %v2071
        %v2098 = vmul.f32 %v1986, %v2073
        %v2099 = vmul.f32 %v1987, %v2075
        %v2100 = vmul.f32 %v1988, %v2077
        %v2101 = vmul.f32 %v1989, %v2079
        %v2102 = vmul.f32 %v1990, %v2081
        %v2103 = vmul.f32 %v1991, %v2083
        %v2104 = vmul.f32 %v1992, %v2085
        %v2105 = vmul.f32 %v1993, %v2087
        %v2106 = vmul.f32 %v1994, %v2089
        %v2107 = vmul.f32 %v1995, %v2091
        %v2108 = vpack.c.bf16 %v2093, %v2092
        %v2109 = vpack.c.bf16 %v2095, %v2094
        %v2110 = vpack.c.bf16 %v2097, %v2096
        %v2111 = vpack.c.bf16 %v2099, %v2098
        %v2112 = vpack.c.bf16 %v2101, %v2100
        %v2113 = vpack.c.bf16 %v2103, %v2102
        %v2114 = vpack.c.bf16 %v2105, %v2104
        %v2115 = vpack.c.bf16 %v2107, %v2106
        %v2116 = vld [vmem:[%s6] sm:$0xf]
        %v2117 = vld [vmem:[%s6 + $0x4] sm:$0xf]
        %v2118 = vld [vmem:[%s6 + $0x8] sm:$0xf]
        %v2119 = vld [vmem:[%s6 + $0xc] sm:$0xf]
        %v2124 = vunpack.c.l.b16 %v2116
        %v2125 = vunpack.c.l.b16 %v2117
        %v2126 = vunpack.c.l.b16 %v2118
        %v2127 = vunpack.c.l.b16 %v2119
        %v2128 = vpack.c.b16 %v2125, %v2124
        %v2129 = vpack.c.b16 %v2127, %v2126
        %vm2132 = vcmask 261120
        %v2134 = vsel %vm2132, %v2108, 0
        %v2137 = vsel %vm2132, %v2109, 0
        %v2140 = vsel %vm2132, %v2110, 0
        %v2143 = vsel %vm2132, %v2111, 0
        %v2146 = vsel %vm2132, %v2112, 0
        %v2149 = vsel %vm2132, %v2113, 0
        %v2152 = vsel %vm2132, %v2114, 0
        %v2155 = vsel %vm2132, %v2115, 0
        %2157 = vmatprep.subr.bf16.mxu0 0
        %2158 = vmatpush1.bf16.msra.mxu0 %v2128
        %2159 = vmatprep.subr.bf16.mxu0 0
        %2160 = vmatpush1.bf16.msra.mxu0 %v2129
        %2161 = vmatprep.subr.bf16.mxu0 0
        %2162 = vmatpush1.bf16.msra.mxu0 0
        %2163 = vmatprep.subr.bf16.mxu0 0
        %2164 = vmatpush1.bf16.msra.mxu0 0
        %2165 = vmatprep.subr.bf16.mxu0 0
        %2166 = vmatpush1.bf16.msra.mxu0 0
        %2167 = vmatprep.subr.bf16.mxu0 0
        %2168 = vmatpush1.bf16.msra.mxu0 0
        %2169 = vmatprep.subr.bf16.mxu0 0
        %2170 = vmatpush1.bf16.msra.mxu0 0
        %2171 = vmatprep.subr.bf16.mxu0 0
        %2172 = vmatpush1.bf16.msra.mxu0 0
        %2173 = vmatprep.subr.bf16.mxu0 0
        %2174 = vmatpush1.bf16.msra.mxu0 0
        %2175 = vmatprep.subr.bf16.mxu0 0
        %2176 = vmatpush1.bf16.msra.mxu0 0
        %2177 = vmatprep.subr.bf16.mxu0 0
        %2178 = vmatpush1.bf16.msra.mxu0 0
        %2179 = vmatprep.subr.bf16.mxu0 0
        %2180 = vmatpush1.bf16.msra.mxu0 0
        %2181 = vmatprep.subr.bf16.mxu0 0
        %2182 = vmatpush1.bf16.msra.mxu0 0
        %2183 = vmatprep.subr.bf16.mxu0 0
        %2184 = vmatpush1.bf16.msra.mxu0 0
        %2185 = vmatprep.subr.bf16.mxu0 0
        %2186 = vmatpush1.bf16.msra.mxu0 0
        %2187 = vmatprep.subr.bf16.mxu0 0
        %2188 = vmatpush1.bf16.msra.mxu0 0
        %2189 = vmatprep.mubr.bf16.mxu0 0
        %2190 = vmatmul.mubr.bf16.gmra.mrb[0].mxu0 %v2134
        %v2191 = vpop.f32.mrb[0].mxu0
        %v2192 = vadd.f32 0.0, %v2191
        %v2193 = vpop.f32.mrb[0].mxu0
        %v2194 = vpop.f32.mrb[0].mxu0
        %v2195 = vadd.f32 0.0, %v2194
        %v2196 = vpop.f32.mrb[0].mxu0
        %2197 = vmatprep.mubr.bf16.mxu0 0
        %2198 = vmatmul.mubr.bf16.gmra.mrb[0].mxu0 %v2137
        %v2199 = vpop.f32.mrb[0].mxu0
        %v2200 = vadd.f32 0.0, %v2199
        %v2201 = vpop.f32.mrb[0].mxu0
        %v2202 = vpop.f32.mrb[0].mxu0
        %v2203 = vadd.f32 0.0, %v2202
        %v2204 = vpop.f32.mrb[0].mxu0
        %2205 = vmatprep.mubr.bf16.mxu0 0
        %2206 = vmatmul.mubr.bf16.gmra.mrb[0].mxu0 %v2140
        %v2207 = vpop.f32.mrb[0].mxu0
        %v2208 = vadd.f32 0.0, %v2207
        %v2209 = vpop.f32.mrb[0].mxu0
        %v2210 = vpop.f32.mrb[0].mxu0
        %v2211 = vadd.f32 0.0, %v2210
        %v2212 = vpop.f32.mrb[0].mxu0
        %2213 = vmatprep.mubr.bf16.mxu0 0
        %2214 = vmatmul.mubr.bf16.gmra.mrb[0].mxu0 %v2143
        %v2215 = vpop.f32.mrb[0].mxu0
        %v2216 = vadd.f32 0.0, %v2215
        %v2217 = vpop.f32.mrb[0].mxu0
        %v2218 = vpop.f32.mrb[0].mxu0
        %v2219 = vadd.f32 0.0, %v2218
        %v2220 = vpop.f32.mrb[0].mxu0
        %2221 = vmatprep.mubr.bf16.mxu0 0
        %2222 = vmatmul.mubr.bf16.gmra.mrb[0].mxu0 %v2146
        %v2223 = vpop.f32.mrb[0].mxu0
        %v2224 = vadd.f32 0.0, %v2223
        %v2225 = vpop.f32.mrb[0].mxu0
        %v2226 = vpop.f32.mrb[0].mxu0
        %v2227 = vadd.f32 0.0, %v2226
        %v2228 = vpop.f32.mrb[0].mxu0
        %2229 = vmatprep.mubr.bf16.mxu0 0
        %2230 = vmatmul.mubr.bf16.gmra.mrb[0].mxu0 %v2149
        %v2231 = vpop.f32.mrb[0].mxu0
        %v2232 = vadd.f32 0.0, %v2231
        %v2233 = vpop.f32.mrb[0].mxu0
        %v2234 = vpop.f32.mrb[0].mxu0
        %v2235 = vadd.f32 0.0, %v2234
        %v2236 = vpop.f32.mrb[0].mxu0
        %2237 = vmatprep.mubr.bf16.mxu0 0
        %2238 = vmatmul.mubr.bf16.gmra.mrb[0].mxu0 %v2152
        %v2239 = vpop.f32.mrb[0].mxu0
        %v2240 = vadd.f32 0.0, %v2239
        %v2241 = vpop.f32.mrb[0].mxu0
        %v2242 = vpop.f32.mrb[0].mxu0
        %v2243 = vadd.f32 0.0, %v2242
        %v2244 = vpop.f32.mrb[0].mxu0
        %2245 = vmatprep.mubr.bf16.mxu0 0
        %2246 = vmatmul.mubr.bf16.gmra.mrb[0].mxu0 %v2155
        %v2247 = vpop.f32.mrb[0].mxu0
        %v2248 = vadd.f32 0.0, %v2247
        %v2249 = vpop.f32.mrb[0].mxu0
        %v2250 = vpop.f32.mrb[0].mxu0
        %v2251 = vadd.f32 0.0, %v2250
        %v2252 = vpop.f32.mrb[0].mxu0
        %2253 = vdwg.mxu0
        %v2254 = vadd.f32 %v474, %v2192
        %v2255 = vadd.f32 %v475, %v2195
        %v2256 = vadd.f32 %v476, %v2200
        %v2257 = vadd.f32 %v477, %v2203
        %v2258 = vadd.f32 %v478, %v2208
        %v2259 = vadd.f32 %v479, %v2211
        %v2260 = vadd.f32 %v480, %v2216
        %v2261 = vadd.f32 %v481, %v2219
        %v2262 = vadd.f32 %v482, %v2224
        %v2263 = vadd.f32 %v483, %v2227
        %v2264 = vadd.f32 %v484, %v2232
        %v2265 = vadd.f32 %v485, %v2235
        %v2266 = vadd.f32 %v486, %v2240
        %v2267 = vadd.f32 %v487, %v2243
        %v2268 = vadd.f32 %v488, %v2248
        %v2269 = vadd.f32 %v489, %v2251
        %2270 = vst.msk [vmem:[%s355] sm:$0xff] %vm660, %v2254
        %2271 = vst.msk [vmem:[%s355 + $0x8] sm:$0xff] %vm660, %v2255
        %2272 = vst.msk [vmem:[%s355 + $0x10] sm:$0xff] %vm660, %v2256
        %2273 = vst.msk [vmem:[%s355 + $0x18] sm:$0xff] %vm660, %v2257
        %2274 = vst.msk [vmem:[%s355 + $0x20] sm:$0xff] %vm660, %v2258
        %2275 = vst.msk [vmem:[%s355 + $0x28] sm:$0xff] %vm660, %v2259
        %2276 = vst.msk [vmem:[%s355 + $0x30] sm:$0xff] %vm660, %v2260
        %2277 = vst.msk [vmem:[%s355 + $0x38] sm:$0xff] %vm660, %v2261
        %2278 = vst.msk [vmem:[%s355 + $0x40] sm:$0xff] %vm660, %v2262
        %2279 = vst.msk [vmem:[%s355 + $0x48] sm:$0xff] %vm660, %v2263
        %2280 = vst.msk [vmem:[%s355 + $0x50] sm:$0xff] %vm660, %v2264
        %2281 = vst.msk [vmem:[%s355 + $0x58] sm:$0xff] %vm660, %v2265
        %2282 = vst.msk [vmem:[%s355 + $0x60] sm:$0xff] %vm660, %v2266
        %2283 = vst.msk [vmem:[%s355 + $0x68] sm:$0xff] %vm660, %v2267
        %2284 = vst.msk [vmem:[%s355 + $0x70] sm:$0xff] %vm660, %v2268
        %2285 = vst.msk [vmem:[%s355 + $0x78] sm:$0xff] %vm660, %v2269
        %s2286 = sand.u32 %s208, 1
        %s2287 = scalar_lea.sflag [#allocation5], %s2286
        %s2288 = sand.u32 %s208, 1
        %s2289 = smul.addr %s2288, 128
        %s2290 = scalar_lea.vmem [#allocation8], %s2289
        // Predicated region
        $region61: #{faster_block_pallas.1} parent=47 // pred_check
          %p2291 = pneg %p218
        $region62: #{faster_block_pallas.1} parent=47 // pred_check_branch
          %2293 = sbr.rel (%p2291) target = $region64
        $region63: #{faster_block_pallas.1} parent=47 // pred_region
          %s2294 = smul.u32 8, %s32
          %s2296 = ssub.s32 2048, 2048
          %2297 = vsyncadd %s2287, %s2296
          %s2298 = smul.addr %s2294, 2
          %s2299 = smul.addr %s31, 32
          %s2300 = sadd.s32 %s2298, %s2299
          %s2301 = smul.addr %s2300, 128
          %s2302 = scalar_lea.hbm %s7, %s2301
          %s2303 = sshll.u32 %s2290, 4
          %s2304 = int_to_ptr.vmem [resolvable:$true] %s2303
          %2309 = dma.vmem_to_hbm [thread:$0]  %s2304, 2048, %s2302, %s2287, 128, 128, 8
        $region64: #{faster_block_pallas.1} parent=47 // pred_fallthru
          _
      $region48: #{faster_block_pallas.1} parent=5 // pred_fallthru
        _
      %p2310 = scmp.le.s32.totalorder 2, %s22
      // Predicated region
      $region65: #{faster_block_pallas.1} parent=5 // pred_check
        %p2311 = pneg %p2310
      $region66: #{faster_block_pallas.1} parent=5 // pred_check_branch
        %2313 = sbr.rel (%p2311) target = $region68
      $region67: #{faster_block_pallas.1} parent=5 // pred_region
        %s2314 = ssub.s32 %s22, 2
        // Predicated region
        $region69: #{faster_block_pallas.1} parent=67 // pred_check
          %p2315 = pneg %p224
        $region70: #{faster_block_pallas.1} parent=67 // pred_check_branch
          %2317 = sbr.rel (%p2315) target = $region72
        $region71: #{faster_block_pallas.1} parent=67 // pred_region
          %s2318 = sand.u32 %s209, 1
          %s2319 = scalar_lea.sflag [#allocation5], %s2318
          %s2320 = sand.u32 %s209, 1
          %s2321 = smul.addr %s2320, 128
          %s2322 = scalar_lea.vmem [#allocation8], %s2321
          %2323 = dma.done %s2319, 2048
        $region72: #{faster_block_pallas.1} parent=67 // pred_fallthru
          _
      $region68: #{faster_block_pallas.1} parent=5 // pred_fallthru
        _
    $region6: #{faster_block_pallas.1} parent=1 // loop_footer
      %s26 = sadd.s32 1, %s22
    $region7: #{faster_block_pallas.1} parent=1 // loop_footer_branch
      %21 = sbr.rel target = $region3
    $region8: #{faster_block_pallas.1} parent=1 // loop_exit
      _
    %2324 = vsyncpa [#allocation4], 1
    %s2325 = scalar_lea.sflag [#allocation4], 1
    %2326 = vsyncpa %s2325, 1
    %2327 = vsyncpa [#allocation7], 1
    %s2328 = scalar_lea.sflag [#allocation7], 1
    %2329 = vsyncpa %s2328, 1
    %2330 = vsyncpa [#allocation5], 1
    %s2331 = scalar_lea.sflag [#allocation5], 1
    %2332 = vsyncpa %s2331, 1

</llo_original>
